<compile_context>
chip_gen: v6e
topology: v6e:2x2x1
jax: 0.10.0
libtpu: 0.0.40
codegen_flags: <defaults>
</compile_context>

<pallas_src>
import functools

import jax
import jax.numpy as jnp
from jax.experimental import pallas as pl
from jax.experimental.pallas import tpu as pltpu

HIDDEN_DIMS = [128, 256, 512, 1024]
KSIZE, STRIDE, PAD = 4, 2, 1
BN_EPS = 1e-5


def _round_up(x, m):
    return ((x + m - 1) // m) * m


def _pad_dim(x, axis, size):
    pad = size - x.shape[axis]
    if pad <= 0:
        return x
    widths = [(0, 0)] * x.ndim
    widths[axis] = (0, pad)
    return jnp.pad(x, widths)


def _conv_bn_relu_kernel(a_ref, b_ref, gamma_ref, beta_ref, o_ref, *, m_valid, eps):
    """Fused im2col-matmul conv + training-mode BatchNorm + ReLU.

    Grid = (Cout_pad // tn, K_pad // tk); grid axis 1 is the contraction axis.
    The f32 output block (m_pad, tn) is resident across the K axis and is
    used directly as the accumulator.
    """
    k = pl.program_id(1)
    prod = jnp.dot(a_ref[...], b_ref[...], preferred_element_type=jnp.float32)

    @pl.when(k == 0)
    def _():
        o_ref[...] = prod

    @pl.when(k > 0)
    def _():
        o_ref[...] += prod

    @pl.when(k == pl.num_programs(1) - 1)
    def _():
        acc = o_ref[...]
        inv_m = 1.0 / float(m_valid)
        # Rows >= m_valid of `a` are exact zeros, so they contribute nothing
        # to either moment: no masking / iota needed.
        mean = jnp.sum(acc, axis=0, keepdims=True) * inv_m
        mean_sq = jnp.sum(acc * acc, axis=0, keepdims=True) * inv_m
        var = mean_sq - mean * mean            # biased, like torch train-mode BN
        scale = jax.lax.rsqrt(var + eps) * gamma_ref[...]
        y = (acc - mean) * scale + beta_ref[...]
        o_ref[...] = jnp.maximum(y, 0.0).astype(o_ref.dtype)


def _im2col(x_nhwc, k, s, p):
    """im2col in the input dtype (call with bf16 to halve staging traffic)."""
    # TODO(synk): for the HBM-bound deeper layers, gather patches in-kernel
    # (pl.ANY input + manual DMA over a kh*kw grid axis) to avoid materializing
    # the 4x-inflated patches array in HBM at all.
    n, h, w, c = x_nhwc.shape
    oh = (h + 2 * p - k) // s + 1
    ow = (w + 2 * p - k) // s + 1
    xp = jnp.pad(x_nhwc, ((0, 0), (p, p), (p, p), (0, 0)))
    cols = []
    for kh in range(k):
        for kw in range(k):
            cols.append(xp[:, kh:kh + s * oh:s, kw:kw + s * ow:s, :])
    patches = jnp.concatenate(cols, axis=-1)  # (n, oh, ow, k*k*c), (kh, kw, c) order
    return patches.reshape(n * oh * ow, k * k * c), oh, ow


def conv_bn_relu_layer(x_nhwc, w_hwio, gamma, beta, *, max_tk=2048,
                       out_tile_budget=8 << 20):
    """One Conv2d(4, stride=2, pad=1, bias=False) + BatchNorm2d(train) + ReLU."""
    n = x_nhwc.shape[0]
    cout = w_hwio.shape[-1]

    # bf16 operands (f32 accumulation in-kernel).
    patches, oh, ow = _im2col(x_nhwc.astype(jnp.bfloat16), KSIZE, STRIDE, PAD)
    m_valid, k_raw = patches.shape
    w_mat = w_hwio.astype(jnp.bfloat16).reshape(-1, cout)  # (kh*kw*cin, cout)

    # Pad only as much as the tiling needs: rows to x16 (bf16 sublane packing),
    # contraction to the K tile (>= 128 lanes), channels to x128.
    tk = min(_round_up(k_raw, 128), max_tk)
    k_pad = _round_up(k_raw, tk)
    m_pad = _round_up(m_valid, 16)
    cout_pad = _round_up(cout, 128)

    a = _pad_dim(_pad_dim(patches, 0, m_pad), 1, k_pad)
    b = _pad_dim(_pad_dim(w_mat, 0, k_pad), 1, cout_pad)
    gamma2 = _pad_dim(gamma.reshape(1, cout).astype(jnp.float32), 1, cout_pad)
    beta2 = _pad_dim(beta.reshape(1, cout).astype(jnp.float32), 1, cout_pad)

    # Stream the (large) patches matrix from HBM exactly once: tn = Cout when
    # the resident (m_pad, tn) f32 output tile fits the budget.
    tn = cout_pad
    while tn > 128 and (m_pad * tn * 4 > out_tile_budget) and tn % 256 == 0:
        tn //= 2
    # TODO(synk): for large batches (m_pad * Cout no longer VMEM-resident,
    # especially on v7x's 64 MiB VMEM) tile M and compute the BN statistics in
    # two passes (per-channel sum / sum-of-squares accumulation + a normalize
    # sweep), which also gives the 2 TensorCores a real parallel axis.

    grid = (cout_pad // tn, k_pad // tk)

    # Explicit VMEM budget: double-buffered bf16 A/B tiles + resident f32
    # output (+ writeback buffer) + BN params + headroom, capped v7x-safe.
    vmem_bytes = (2 * m_pad * tk * 2        # A tiles (bf16, double-buffered)
                  + 2 * tk * tn * 2         # B tiles (bf16, double-buffered)
                  + 2 * m_pad * tn * 4      # resident f32 output block
                  + 4 * cout_pad * 4        # gamma / beta
                  + (8 << 20))              # internal scratch headroom
    vmem_bytes = min(vmem_bytes, 56 << 20)

    kernel = functools.partial(_conv_bn_relu_kernel, m_valid=m_valid, eps=BN_EPS)
    out = pl.pallas_call(
        kernel,
        out_shape=jax.ShapeDtypeStruct((m_pad, cout_pad), jnp.float32),
        grid_spec=pltpu.PrefetchScalarGridSpec(
            num_scalar_prefetch=0,
            grid=grid,
            in_specs=[
                pl.BlockSpec((m_pad, tk), lambda j, k: (0, k)),   # patches
                pl.BlockSpec((tk, tn), lambda j, k: (k, j)),      # weights
                pl.BlockSpec((1, tn), lambda j, k: (0, j)),       # BN gamma
                pl.BlockSpec((1, tn), lambda j, k: (0, j)),       # BN beta
            ],
            out_specs=pl.BlockSpec((m_pad, tn), lambda j, k: (0, j)),
        ),
        compiler_params=pltpu.CompilerParams(
            dimension_semantics=("parallel", "arbitrary"),
            vmem_limit_bytes=vmem_bytes),
    )(a, b, gamma2, beta2)

    return out[:m_valid, :cout].reshape(n, oh, ow, cout)


def init_params(key, in_channels):
    """Deterministic init mirroring VAAL's kaiming_init (conv: kaiming-normal,
    BN: weight=1, bias=0)."""
    params = []
    cin = in_channels
    for dim in HIDDEN_DIMS:
        key, sub = jax.random.split(key)
        fan_in = cin * KSIZE * KSIZE
        std = (2.0 / fan_in) ** 0.5
        w = std * jax.random.normal(sub, (KSIZE, KSIZE, cin, dim), jnp.float32)
        gamma = jnp.ones((dim,), jnp.float32)
        beta = jnp.zeros((dim,), jnp.float32)
        params.append((w, gamma, beta))
        cin = dim
    return params


def vaal_encoder_forward(x_nchw, params):
    x = jnp.transpose(x_nchw, (0, 2, 3, 1))  # NCHW -> NHWC
    for (w, gamma, beta) in params:
        x = conv_bn_relu_layer(x, w, gamma, beta)
    # torch.flatten(x, 1) on an NCHW tensor -> channel-major flatten.
    x_nchw_out = jnp.transpose(x, (0, 3, 1, 2))
    return x_nchw_out.reshape(x_nchw_out.shape[0], -1)


def reference_forward(x_nchw, params, compute_dtype=jnp.float32):
    """Pure-JAX reference (training-mode BN, like a freshly constructed module).

    With compute_dtype=bfloat16 it mirrors the kernel's operand precision
    (bf16 inputs, f32 accumulation) so the comparison isolates kernel
    structure rather than bf16 rounding.
    """
    prec = (jax.lax.Precision.HIGHEST if compute_dtype == jnp.float32
            else jax.lax.Precision.DEFAULT)
    x = x_nchw
    for (w_hwio, gamma, beta) in params:
        w_oihw = jnp.transpose(w_hwio, (3, 2, 0, 1)).astype(compute_dtype)
        y = jax.lax.conv_general_dilated(
            x.astype(compute_dtype), w_oihw, window_strides=(STRIDE, STRIDE),
            padding=((PAD, PAD), (PAD, PAD)),
            dimension_numbers=("NCHW", "OIHW", "NCHW"),
            preferred_element_type=jnp.float32,
            precision=prec)
        mean = jnp.mean(y, axis=(0, 2, 3), keepdims=True)
        var = jnp.mean((y - mean) ** 2, axis=(0, 2, 3), keepdims=True)
        y = (y - mean) * jax.lax.rsqrt(var + BN_EPS)
        y = y * gamma.reshape(1, -1, 1, 1) + beta.reshape(1, -1, 1, 1)
        x = jnp.maximum(y, 0.0)
    return x.reshape(x.shape[0], -1)


if __name__ == "__main__":
    key = jax.random.PRNGKey(0)
    key, xkey = jax.random.split(key)
    N, C, H, W = 2, 3, 32, 32  # cfg_enc['in_channels'] = 3, CIFAR-like input
    x = jax.random.normal(xkey, (N, C, H, W), jnp.float32)
    params = init_params(key, C)

    out = jax.block_until_ready(vaal_encoder_forward(x, params))

    # 32 -> 16 -> 8 -> 4 -> 2 spatial; 1024 channels; flatten -> (N, 4096).
    assert out.shape == (N, 1024 * 2 * 2), out.shape
    assert bool(jnp.all(jnp.isfinite(out)))

    # Primary correctness check: precision-matched reference (same bf16
    # operands, f32 accumulation) -> differences are kernel-structural only.
    ref_matched = jax.block_until_ready(
        reference_forward(x, params, compute_dtype=jnp.bfloat16))
    err_matched = float(jnp.max(jnp.abs(out - ref_matched)))
    assert err_matched < 1e-2, f"max abs err vs precision-matched ref {err_matched}"

    # Sanity check vs. the full-f32 reference (difference is bf16 rounding).
    ref_f32 = jax.block_until_ready(
        reference_forward(x, params, compute_dtype=jnp.float32))
    err_f32 = float(jnp.max(jnp.abs(out - ref_f32)))
    assert err_f32 < 5e-1, f"max abs err vs f32 ref {err_f32}"

    print("KERNEL_OK")
</pallas_src>

<mosaic_0001>
module attributes {stable_mosaic.version = 11 : i64} {
  func.func @_conv_bn_relu_kernel(%arg0: i32, %arg1: i32, %arg2: memref<512x128xbf16, #tpu.memory_space<vmem>>, %arg3: memref<128x128xbf16, #tpu.memory_space<vmem>>, %arg4: memref<1x128xf32, #tpu.memory_space<vmem>>, %arg5: memref<1x128xf32, #tpu.memory_space<vmem>>, %arg6: memref<512x128xf32, #tpu.memory_space<vmem>>) attributes {dimension_semantics = [#tpu.dimension_semantics<parallel>, #tpu.dimension_semantics<arbitrary>], iteration_bounds = array<i64: 1, 1>, scalar_prefetch = 0 : i64, scratch_operands = 0 : i64, tpu.core_type = #tpu.core_type<tc>, window_params = [{transform_indices = @transform_0, window_bounds = array<i64: 512, 128>}, {transform_indices = @transform_1, window_bounds = array<i64: 128, 128>}, {transform_indices = @transform_2, window_bounds = array<i64: 1, 128>}, {transform_indices = @transform_3, window_bounds = array<i64: 1, 128>}, {transform_indices = @transform_4, window_bounds = array<i64: 512, 128>}]} {
    %c0 = arith.constant 0 : index
    %c0_0 = arith.constant 0 : index
    %0 = vector.load %arg2[%c0, %c0_0] : memref<512x128xbf16, #tpu.memory_space<vmem>>, vector<512x128xbf16>
    %c0_1 = arith.constant 0 : index
    %c0_2 = arith.constant 0 : index
    %1 = vector.load %arg3[%c0_1, %c0_2] : memref<128x128xbf16, #tpu.memory_space<vmem>>, vector<128x128xbf16>
    %cst = arith.constant dense<0.000000e+00> : vector<512x128xf32>
    %2 = tpu.matmul %0, %1, %cst {dimension_numbers = #tpu.dot_dimension_numbers<[1], [0], [0], [1], [0, 0, 1, 1], [], []>} : vector<512x128xbf16>, vector<128x128xbf16>, vector<512x128xf32> -> vector<512x128xf32>
    %c0_i32 = arith.constant 0 : i32
    %3 = arith.cmpi eq, %arg1, %c0_i32 : i32
    %4 = arith.extui %3 : i1 to i32
    %c0_i32_3 = arith.constant 0 : i32
    %5 = arith.cmpi ne, %4, %c0_i32_3 : i32
    scf.if %5 {
      %c0_8 = arith.constant 0 : index
      %c0_9 = arith.constant 0 : index
      %12 = vector.load %arg6[%c0_8, %c0_9] : memref<512x128xf32, #tpu.memory_space<vmem>>, vector<512x128xf32>
      tpu.vector_store %arg6[%c0_8, %c0_9], %2 {strides = array<i32>} : memref<512x128xf32, #tpu.memory_space<vmem>>, vector<512x128xf32>,
    } else {
    }
    %c0_i32_4 = arith.constant 0 : i32
    %6 = arith.cmpi sgt, %arg1, %c0_i32_4 : i32
    %7 = arith.extui %6 : i1 to i32
    %c0_i32_5 = arith.constant 0 : i32
    %8 = arith.cmpi ne, %7, %c0_i32_5 : i32
    scf.if %8 {
      %c0_8 = arith.constant 0 : index
      %c0_9 = arith.constant 0 : index
      %12 = vector.load %arg6[%c0_8, %c0_9] : memref<512x128xf32, #tpu.memory_space<vmem>>, vector<512x128xf32>
      %13 = arith.addf %12, %2 : vector<512x128xf32>
      %c0_10 = arith.constant 0 : index
      %c0_11 = arith.constant 0 : index
      %14 = vector.load %arg6[%c0_10, %c0_11] : memref<512x128xf32, #tpu.memory_space<vmem>>, vector<512x128xf32>
      tpu.vector_store %arg6[%c0_10, %c0_11], %13 {strides = array<i32>} : memref<512x128xf32, #tpu.memory_space<vmem>>, vector<512x128xf32>,
    } else {
    }
    %c0_i32_6 = arith.constant 0 : i32
    %9 = arith.cmpi eq, %arg1, %c0_i32_6 : i32
    %10 = arith.extui %9 : i1 to i32
    %c0_i32_7 = arith.constant 0 : i32
    %11 = arith.cmpi ne, %10, %c0_i32_7 : i32
    scf.if %11 {
      %c0_8 = arith.constant 0 : index
      %c0_9 = arith.constant 0 : index
      %12 = vector.load %arg6[%c0_8, %c0_9] : memref<512x128xf32, #tpu.memory_space<vmem>>, vector<512x128xf32>
      %cst_10 = arith.constant dense<0.000000e+00> : vector<128xf32>
      %13 = vector.multi_reduction <add>, %12, %cst_10 [0] : vector<512x128xf32> to vector<128xf32>
      %14 = vector.shape_cast %13 : vector<128xf32> to vector<1x128xf32>
      %cst_11 = arith.constant 0.001953125 : f32
      %15 = vector.broadcast %cst_11 : f32 to vector<1x128xf32>
      %16 = arith.mulf %14, %15 : vector<1x128xf32>
      %17 = arith.mulf %12, %12 : vector<512x128xf32>
      %cst_12 = arith.constant dense<0.000000e+00> : vector<128xf32>
      %18 = vector.multi_reduction <add>, %17, %cst_12 [0] : vector<512x128xf32> to vector<128xf32>
      %19 = vector.shape_cast %18 : vector<128xf32> to vector<1x128xf32>
      %cst_13 = arith.constant 0.001953125 : f32
      %20 = vector.broadcast %cst_13 : f32 to vector<1x128xf32>
      %21 = arith.mulf %19, %20 : vector<1x128xf32>
      %22 = arith.mulf %16, %16 : vector<1x128xf32>
      %23 = arith.subf %21, %22 : vector<1x128xf32>
      %cst_14 = arith.constant 9.99999974E-6 : f32
      %24 = vector.broadcast %cst_14 : f32 to vector<1x128xf32>
      %25 = arith.addf %23, %24 : vector<1x128xf32>
      %26 = math.rsqrt %25 : vector<1x128xf32>
      %c0_15 = arith.constant 0 : index
      %c0_16 = arith.constant 0 : index
      %27 = vector.load %arg4[%c0_15, %c0_16] : memref<1x128xf32, #tpu.memory_space<vmem>>, vector<1x128xf32>
      %28 = arith.mulf %26, %27 : vector<1x128xf32>
      %29 = vector.broadcast %16 : vector<1x128xf32> to vector<512x128xf32>
      %30 = arith.subf %12, %29 : vector<512x128xf32>
      %31 = vector.broadcast %28 : vector<1x128xf32> to vector<512x128xf32>
      %32 = arith.mulf %30, %31 : vector<512x128xf32>
      %c0_17 = arith.constant 0 : index
      %c0_18 = arith.constant 0 : index
      %33 = vector.load %arg5[%c0_17, %c0_18] : memref<1x128xf32, #tpu.memory_space<vmem>>, vector<1x128xf32>
      %34 = vector.broadcast %33 : vector<1x128xf32> to vector<512x128xf32>
      %35 = arith.addf %32, %34 : vector<512x128xf32>
      %cst_19 = arith.constant 0.000000e+00 : f32
      %36 = vector.broadcast %cst_19 : f32 to vector<512x128xf32>
      %37 = arith.maximumf %35, %36 : vector<512x128xf32>
      %c0_20 = arith.constant 0 : index
      %c0_21 = arith.constant 0 : index
      %38 = vector.load %arg6[%c0_20, %c0_21] : memref<512x128xf32, #tpu.memory_space<vmem>>, vector<512x128xf32>
      tpu.vector_store %arg6[%c0_20, %c0_21], %37 {strides = array<i32>} : memref<512x128xf32, #tpu.memory_space<vmem>>, vector<512x128xf32>,
    } else {
    }
    return
  }
  func.func @transform_0(%arg0: i32, %arg1: i32) -> (i32, i32) {
    %c0_i32 = arith.constant 0 : i32
    %c0_i32_0 = arith.constant 0 : i32
    return %c0_i32, %arg1 : i32, i32
  }
  func.func @transform_1(%arg0: i32, %arg1: i32) -> (i32, i32) {
    %c0_i32 = arith.constant 0 : i32
    return %arg1, %arg0 : i32, i32
  }
  func.func @transform_2(%arg0: i32, %arg1: i32) -> (i32, i32) {
    %c0_i32 = arith.constant 0 : i32
    %c0_i32_0 = arith.constant 0 : i32
    return %c0_i32, %arg0 : i32, i32
  }
  func.func @transform_3(%arg0: i32, %arg1: i32) -> (i32, i32) {
    %c0_i32 = arith.constant 0 : i32
    %c0_i32_0 = arith.constant 0 : i32
    return %c0_i32, %arg0 : i32, i32
  }
  func.func @transform_4(%arg0: i32, %arg1: i32) -> (i32, i32) {
    %c0_i32 = arith.constant 0 : i32
    %c0_i32_0 = arith.constant 0 : i32
    return %c0_i32, %arg0 : i32, i32
  }
}

</mosaic_0001>

<llo_original>
// kernel: tpu_custom_call.1
$region0: #{tpu_custom_call.1}
  #allocation0 [shape = 'u32[]', space=smem, size = 0x4, offset = 0x4, fixed_abs, tag = 'smem constant byte address 0x4 - core index']
  #allocation1 [shape = 'u32[144,128]{1,0:T(1,128)}', space=vmem, size = 0x12000, scoped, tag = 'internal scratch']
  %s0 = inlined_call_operand.hbm [shape: bf16[512,128], index: 0, kind: input, shape index: {}]
  %s1 = inlined_call_operand.hbm [shape: bf16[128,128], index: 1, kind: input, shape index: {}]
  %s2 = inlined_call_operand.vmem [shape: f32[1,128], index: 2, kind: input, shape index: {}]
  %s3 = inlined_call_operand.vmem [shape: f32[1,128], index: 3, kind: input, shape index: {}]
  %s4 = inlined_call_operand.hbm [shape: f32[512,128], index: 4, kind: output, shape index: {}]
  %s5 = sld [smem:[#allocation0]]
  $region46: #{tpu_custom_call.1} parent=0
    _
  %s7 = ssub.s32 1, %s5
  %s8 = scalar_select 0, %s7, %s5
  $region1: #{tpu_custom_call.1} parent=0
    #allocation2 [shape = 'u8[131072]{0}', space=vmem, size = 0x20000, scoped, tag = 'input window, operand 0, single buffered']
    #allocation3 [shape = 's32[1]{0}', space=sflag, size = 0x4, scoped, tag = 'scoped memory for tpu_custom_call.1']
    #allocation4 [shape = 's32[1]{0}', space=sflag, size = 0x4, scoped, tag = 'scoped memory for tpu_custom_call.1']
    #allocation5 [shape = 'u8[32768]{0}', space=vmem, size = 0x8000, scoped, tag = 'input window, operand 1, single buffered']
    #allocation6 [shape = 's32[1]{0}', space=sflag, size = 0x4, scoped, tag = 'scoped memory for tpu_custom_call.1']
    #allocation7 [shape = 'u8[262144]{0}', space=vmem, size = 0x40000, scoped, tag = 'output window, operand 0, single buffered']
    %9 = vsyncpa [#allocation3], 0
    %10 = vsyncpa [#allocation6], 0
    %11 = vsyncpa [#allocation4], 0
    // Predicated region
    $region2: #{tpu_custom_call.1} parent=1 // pred_check
      _
    $region3: #{tpu_custom_call.1} parent=1 // pred_check_branch
      %13 = sbr.rel (0) target = $region5
    $region4: #{tpu_custom_call.1} parent=1 // pred_region
      %s15 = ssub.s32 4096, 4096
      %16 = vsyncadd [#allocation3], %s15
      %s17 = sshll.u32 [#allocation2], 4
      %s18 = int_to_ptr.vmem [resolvable:$true] %s17
      %23 = dma.hbm_to_vmem [thread:$0]  %s0, 4096, %s18, [#allocation3], 64, 64, 4
    $region5: #{tpu_custom_call.1} parent=1 // pred_fallthru
      _
    // Predicated region
    $region6: #{tpu_custom_call.1} parent=1 // pred_check
      _
    $region7: #{tpu_custom_call.1} parent=1 // pred_check_branch
      %25 = sbr.rel (0) target = $region9
    $region8: #{tpu_custom_call.1} parent=1 // pred_region
      %s27 = ssub.s32 1024, 1024
      %28 = vsyncadd [#allocation6], %s27
      %s29 = sshll.u32 [#allocation5], 4
      %s30 = int_to_ptr.vmem [resolvable:$true] %s29
      %35 = dma.hbm_to_vmem [thread:$0]  %s1, 1024, %s30, [#allocation6], 64, 64, 4
    $region9: #{tpu_custom_call.1} parent=1 // pred_fallthru
      _
    // Predicated region
    $region10: #{tpu_custom_call.1} parent=1 // pred_check
      _
    $region11: #{tpu_custom_call.1} parent=1 // pred_check_branch
      %37 = sbr.rel (0) target = $region13
    $region12: #{tpu_custom_call.1} parent=1 // pred_region
      _
    $region13: #{tpu_custom_call.1} parent=1 // pred_fallthru
      _
    // Predicated region
    $region14: #{tpu_custom_call.1} parent=1 // pred_check
      _
    $region15: #{tpu_custom_call.1} parent=1 // pred_check_branch
      %39 = sbr.rel (0) target = $region17
    $region16: #{tpu_custom_call.1} parent=1 // pred_region
      _
    $region17: #{tpu_custom_call.1} parent=1 // pred_fallthru
      _
    // Predicated region
    $region18: #{tpu_custom_call.1} parent=1 // pred_check
      _
    $region19: #{tpu_custom_call.1} parent=1 // pred_check_branch
      %41 = sbr.rel (0) target = $region21
    $region20: #{tpu_custom_call.1} parent=1 // pred_region
      %42 = dma.done [#allocation3], 4096
    $region21: #{tpu_custom_call.1} parent=1 // pred_fallthru
      _
    // Predicated region
    $region22: #{tpu_custom_call.1} parent=1 // pred_check
      _
    $region23: #{tpu_custom_call.1} parent=1 // pred_check_branch
      %44 = sbr.rel (0) target = $region25
    $region24: #{tpu_custom_call.1} parent=1 // pred_region
      %45 = dma.done [#allocation6], 1024
    $region25: #{tpu_custom_call.1} parent=1 // pred_fallthru
      _
    %v47 = vld [vmem:[#allocation2] sm:$0xf]
    %v48 = vld [vmem:[#allocation2 + $0x4] sm:$0xf]
    %v49 = vld [vmem:[#allocation2 + $0x8] sm:$0xf]
    %v50 = vld [vmem:[#allocation2 + $0xc] sm:$0xf]
    %v51 = vld [vmem:[#allocation2 + $0x10] sm:$0xf]
    %v52 = vld [vmem:[#allocation2 + $0x14] sm:$0xf]
    %v53 = vld [vmem:[#allocation2 + $0x18] sm:$0xf]
    %v54 = vld [vmem:[#allocation2 + $0x1c] sm:$0xf]
    %v55 = vld [vmem:[#allocation2 + $0x20] sm:$0xf]
    %v56 = vld [vmem:[#allocation2 + $0x24] sm:$0xf]
    %v57 = vld [vmem:[#allocation2 + $0x28] sm:$0xf]
    %v58 = vld [vmem:[#allocation2 + $0x2c] sm:$0xf]
    %v59 = vld [vmem:[#allocation2 + $0x30] sm:$0xf]
    %v60 = vld [vmem:[#allocation2 + $0x34] sm:$0xf]
    %v61 = vld [vmem:[#allocation2 + $0x38] sm:$0xf]
    %v62 = vld [vmem:[#allocation2 + $0x3c] sm:$0xf]
    %v63 = vld [vmem:[#allocation2 + $0x40] sm:$0xf]
    %v64 = vld [vmem:[#allocation2 + $0x44] sm:$0xf]
    %v65 = vld [vmem:[#allocation2 + $0x48] sm:$0xf]
    %v66 = vld [vmem:[#allocation2 + $0x4c] sm:$0xf]
    %v67 = vld [vmem:[#allocation2 + $0x50] sm:$0xf]
    %v68 = vld [vmem:[#allocation2 + $0x54] sm:$0xf]
    %v69 = vld [vmem:[#allocation2 + $0x58] sm:$0xf]
    %v70 = vld [vmem:[#allocation2 + $0x5c] sm:$0xf]
    %v71 = vld [vmem:[#allocation2 + $0x60] sm:$0xf]
    %v72 = vld [vmem:[#allocation2 + $0x64] sm:$0xf]
    %v73 = vld [vmem:[#allocation2 + $0x68] sm:$0xf]
    %v74 = vld [vmem:[#allocation2 + $0x6c] sm:$0xf]
    %v75 = vld [vmem:[#allocation2 + $0x70] sm:$0xf]
    %v76 = vld [vmem:[#allocation2 + $0x74] sm:$0xf]
    %v77 = vld [vmem:[#allocation2 + $0x78] sm:$0xf]
    %v78 = vld [vmem:[#allocation2 + $0x7c] sm:$0xf]
    %v79 = vld [vmem:[#allocation2 + $0x80] sm:$0xf]
    %v80 = vld [vmem:[#allocation2 + $0x84] sm:$0xf]
    %v81 = vld [vmem:[#allocation2 + $0x88] sm:$0xf]
    %v82 = vld [vmem:[#allocation2 + $0x8c] sm:$0xf]
    %v83 = vld [vmem:[#allocation2 + $0x90] sm:$0xf]
    %v84 = vld [vmem:[#allocation2 + $0x94] sm:$0xf]
    %v85 = vld [vmem:[#allocation2 + $0x98] sm:$0xf]
    %v86 = vld [vmem:[#allocation2 + $0x9c] sm:$0xf]
    %v87 = vld [vmem:[#allocation2 + $0xa0] sm:$0xf]
    %v88 = vld [vmem:[#allocation2 + $0xa4] sm:$0xf]
    %v89 = vld [vmem:[#allocation2 + $0xa8] sm:$0xf]
    %v90 = vld [vmem:[#allocation2 + $0xac] sm:$0xf]
    %v91 = vld [vmem:[#allocation2 + $0xb0] sm:$0xf]
    %v92 = vld [vmem:[#allocation2 + $0xb4] sm:$0xf]
    %v93 = vld [vmem:[#allocation2 + $0xb8] sm:$0xf]
    %v94 = vld [vmem:[#allocation2 + $0xbc] sm:$0xf]
    %v95 = vld [vmem:[#allocation2 + $0xc0] sm:$0xf]
    %v96 = vld [vmem:[#allocation2 + $0xc4] sm:$0xf]
    %v97 = vld [vmem:[#allocation2 + $0xc8] sm:$0xf]
    %v98 = vld [vmem:[#allocation2 + $0xcc] sm:$0xf]
    %v99 = vld [vmem:[#allocation2 + $0xd0] sm:$0xf]
    %v100 = vld [vmem:[#allocation2 + $0xd4] sm:$0xf]
    %v101 = vld [vmem:[#allocation2 + $0xd8] sm:$0xf]
    %v102 = vld [vmem:[#allocation2 + $0xdc] sm:$0xf]
    %v103 = vld [vmem:[#allocation2 + $0xe0] sm:$0xf]
    %v104 = vld [vmem:[#allocation2 + $0xe4] sm:$0xf]
    %v105 = vld [vmem:[#allocation2 + $0xe8] sm:$0xf]
    %v106 = vld [vmem:[#allocation2 + $0xec] sm:$0xf]
    %v107 = vld [vmem:[#allocation2 + $0xf0] sm:$0xf]
    %v108 = vld [vmem:[#allocation2 + $0xf4] sm:$0xf]
    %v109 = vld [vmem:[#allocation2 + $0xf8] sm:$0xf]
    %v110 = vld [vmem:[#allocation2 + $0xfc] sm:$0xf]
    %v111 = vld [vmem:[#allocation5] sm:$0xf]
    %v112 = vld [vmem:[#allocation5 + $0x4] sm:$0xf]
    %v113 = vld [vmem:[#allocation5 + $0x8] sm:$0xf]
    %v114 = vld [vmem:[#allocation5 + $0xc] sm:$0xf]
    %v115 = vld [vmem:[#allocation5 + $0x10] sm:$0xf]
    %v116 = vld [vmem:[#allocation5 + $0x14] sm:$0xf]
    %v117 = vld [vmem:[#allocation5 + $0x18] sm:$0xf]
    %v118 = vld [vmem:[#allocation5 + $0x1c] sm:$0xf]
    %v119 = vld [vmem:[#allocation5 + $0x20] sm:$0xf]
    %v120 = vld [vmem:[#allocation5 + $0x24] sm:$0xf]
    %v121 = vld [vmem:[#allocation5 + $0x28] sm:$0xf]
    %v122 = vld [vmem:[#allocation5 + $0x2c] sm:$0xf]
    %v123 = vld [vmem:[#allocation5 + $0x30] sm:$0xf]
    %v124 = vld [vmem:[#allocation5 + $0x34] sm:$0xf]
    %v125 = vld [vmem:[#allocation5 + $0x38] sm:$0xf]
    %v126 = vld [vmem:[#allocation5 + $0x3c] sm:$0xf]
    %v191 = vunpack.c.l.b16 %v47
    %v192 = vunpack.c.l.b16 %v48
    %v193 = vunpack.c.l.b16 %v49
    %v194 = vunpack.c.l.b16 %v50
    %v195 = vunpack.c.l.b16 %v51
    %v196 = vunpack.c.l.b16 %v52
    %v197 = vunpack.c.l.b16 %v53
    %v198 = vunpack.c.l.b16 %v54
    %v199 = vunpack.c.l.b16 %v55
    %v200 = vunpack.c.l.b16 %v56
    %v201 = vunpack.c.l.b16 %v57
    %v202 = vunpack.c.l.b16 %v58
    %v203 = vunpack.c.l.b16 %v59
    %v204 = vunpack.c.l.b16 %v60
    %v205 = vunpack.c.l.b16 %v61
    %v206 = vunpack.c.l.b16 %v62
    %v207 = vunpack.c.l.b16 %v63
    %v208 = vunpack.c.l.b16 %v64
    %v209 = vunpack.c.l.b16 %v65
    %v210 = vunpack.c.l.b16 %v66
    %v211 = vunpack.c.l.b16 %v67
    %v212 = vunpack.c.l.b16 %v68
    %v213 = vunpack.c.l.b16 %v69
    %v214 = vunpack.c.l.b16 %v70
    %v215 = vunpack.c.l.b16 %v71
    %v216 = vunpack.c.l.b16 %v72
    %v217 = vunpack.c.l.b16 %v73
    %v218 = vunpack.c.l.b16 %v74
    %v219 = vunpack.c.l.b16 %v75
    %v220 = vunpack.c.l.b16 %v76
    %v221 = vunpack.c.l.b16 %v77
    %v222 = vunpack.c.l.b16 %v78
    %v223 = vunpack.c.l.b16 %v79
    %v224 = vunpack.c.l.b16 %v80
    %v225 = vunpack.c.l.b16 %v81
    %v226 = vunpack.c.l.b16 %v82
    %v227 = vunpack.c.l.b16 %v83
    %v228 = vunpack.c.l.b16 %v84
    %v229 = vunpack.c.l.b16 %v85
    %v230 = vunpack.c.l.b16 %v86
    %v231 = vunpack.c.l.b16 %v87
    %v232 = vunpack.c.l.b16 %v88
    %v233 = vunpack.c.l.b16 %v89
    %v234 = vunpack.c.l.b16 %v90
    %v235 = vunpack.c.l.b16 %v91
    %v236 = vunpack.c.l.b16 %v92
    %v237 = vunpack.c.l.b16 %v93
    %v238 = vunpack.c.l.b16 %v94
    %v239 = vunpack.c.l.b16 %v95
    %v240 = vunpack.c.l.b16 %v96
    %v241 = vunpack.c.l.b16 %v97
    %v242 = vunpack.c.l.b16 %v98
    %v243 = vunpack.c.l.b16 %v99
    %v244 = vunpack.c.l.b16 %v100
    %v245 = vunpack.c.l.b16 %v101
    %v246 = vunpack.c.l.b16 %v102
    %v247 = vunpack.c.l.b16 %v103
    %v248 = vunpack.c.l.b16 %v104
    %v249 = vunpack.c.l.b16 %v105
    %v250 = vunpack.c.l.b16 %v106
    %v251 = vunpack.c.l.b16 %v107
    %v252 = vunpack.c.l.b16 %v108
    %v253 = vunpack.c.l.b16 %v109
    %v254 = vunpack.c.l.b16 %v110
    %v255 = vpack.c.b16 %v192, %v191
    %v256 = vpack.c.b16 %v194, %v193
    %v257 = vpack.c.b16 %v196, %v195
    %v258 = vpack.c.b16 %v198, %v197
    %v259 = vpack.c.b16 %v200, %v199
    %v260 = vpack.c.b16 %v202, %v201
    %v261 = vpack.c.b16 %v204, %v203
    %v262 = vpack.c.b16 %v206, %v205
    %v263 = vpack.c.b16 %v208, %v207
    %v264 = vpack.c.b16 %v210, %v209
    %v265 = vpack.c.b16 %v212, %v211
    %v266 = vpack.c.b16 %v214, %v213
    %v267 = vpack.c.b16 %v216, %v215
    %v268 = vpack.c.b16 %v218, %v217
    %v269 = vpack.c.b16 %v220, %v219
    %v270 = vpack.c.b16 %v222, %v221
    %v271 = vpack.c.b16 %v224, %v223
    %v272 = vpack.c.b16 %v226, %v225
    %v273 = vpack.c.b16 %v228, %v227
    %v274 = vpack.c.b16 %v230, %v229
    %v275 = vpack.c.b16 %v232, %v231
    %v276 = vpack.c.b16 %v234, %v233
    %v277 = vpack.c.b16 %v236, %v235
    %v278 = vpack.c.b16 %v238, %v237
    %v279 = vpack.c.b16 %v240, %v239
    %v280 = vpack.c.b16 %v242, %v241
    %v281 = vpack.c.b16 %v244, %v243
    %v282 = vpack.c.b16 %v246, %v245
    %v283 = vpack.c.b16 %v248, %v247
    %v284 = vpack.c.b16 %v250, %v249
    %v285 = vpack.c.b16 %v252, %v251
    %v286 = vpack.c.b16 %v254, %v253
    %v335 = vunpack.c.l.b16 %v111
    %v336 = vunpack.c.l.b16 %v112
    %v337 = vunpack.c.l.b16 %v113
    %v338 = vunpack.c.l.b16 %v114
    %v339 = vunpack.c.l.b16 %v115
    %v340 = vunpack.c.l.b16 %v116
    %v341 = vunpack.c.l.b16 %v117
    %v342 = vunpack.c.l.b16 %v118
    %v343 = vunpack.c.l.b16 %v119
    %v344 = vunpack.c.l.b16 %v120
    %v345 = vunpack.c.l.b16 %v121
    %v346 = vunpack.c.l.b16 %v122
    %v347 = vunpack.c.l.b16 %v123
    %v348 = vunpack.c.l.b16 %v124
    %v349 = vunpack.c.l.b16 %v125
    %v350 = vunpack.c.l.b16 %v126
    %v351 = vpack.c.b16 %v336, %v335
    %v352 = vpack.c.b16 %v338, %v337
    %v353 = vpack.c.b16 %v340, %v339
    %v354 = vpack.c.b16 %v342, %v341
    %v355 = vpack.c.b16 %v344, %v343
    %v356 = vpack.c.b16 %v346, %v345
    %v357 = vpack.c.b16 %v348, %v347
    %v358 = vpack.c.b16 %v350, %v349
    %367 = vmatprep.subr.bf16.mxu0 0
    %368 = vmatpush1.bf16.msra.mxu0 %v358
    %369 = vmatprep.subr.bf16.mxu0 0
    %370 = vmatpush1.bf16.msra.mxu0 %v357
    %371 = vmatprep.subr.bf16.mxu0 0
    %372 = vmatpush1.bf16.msra.mxu0 %v356
    %373 = vmatprep.subr.bf16.mxu0 0
    %374 = vmatpush1.bf16.msra.mxu0 %v355
    %375 = vmatprep.subr.bf16.mxu0 0
    %376 = vmatpush1.bf16.msra.mxu0 %v354
    %377 = vmatprep.subr.bf16.mxu0 0
    %378 = vmatpush1.bf16.msra.mxu0 %v353
    %379 = vmatprep.subr.bf16.mxu0 0
    %380 = vmatpush1.bf16.msra.mxu0 %v352
    %381 = vmatprep.subr.bf16.mxu0 0
    %382 = vmatpush1.bf16.msra.mxu0 %v351
    %383 = vmatprep.subr.bf16.mxu0 0
    %384 = vmatpush2.bf16.msra.mxu0 0
    %385 = vmatprep.subr.bf16.mxu0 0
    %386 = vmatpush2.bf16.msra.mxu0 0
    %387 = vmatprep.subr.bf16.mxu0 0
    %388 = vmatpush2.bf16.msra.mxu0 0
    %389 = vmatprep.subr.bf16.mxu0 0
    %390 = vmatpush2.bf16.msra.mxu0 0
    %391 = vmatprep.subr.bf16.mxu0 0
    %392 = vmatpush2.bf16.msra.mxu0 0
    %393 = vmatprep.subr.bf16.mxu0 0
    %394 = vmatpush2.bf16.msra.mxu0 0
    %395 = vmatprep.subr.bf16.mxu0 0
    %396 = vmatpush2.bf16.msra.mxu0 0
    %397 = vmatprep.subr.bf16.mxu0 0
    %398 = vmatpush2.bf16.msra.mxu0 0
    %399 = vmatprep.mubr.bf16.mxu0 0
    %400 = vmatmul.mubr.bf16.gmra.mxu0 %v255
    %v401 = vpop.f32.mrf.mxu0
    %v402 = vadd.f32 0.0, %v401
    %v403 = vpop.f32.mrf.mxu0
    %v404 = vpop.f32.mrf.mxu0
    %v405 = vadd.f32 0.0, %v404
    %v406 = vpop.f32.mrf.mxu0
    %407 = vmatprep.mubr.bf16.mxu0 0
    %408 = vmatmul.mubr.bf16.gmra.mxu0 %v256
    %v409 = vpop.f32.mrf.mxu0
    %v410 = vadd.f32 0.0, %v409
    %v411 = vpop.f32.mrf.mxu0
    %v412 = vpop.f32.mrf.mxu0
    %v413 = vadd.f32 0.0, %v412
    %v414 = vpop.f32.mrf.mxu0
    %415 = vmatprep.mubr.bf16.mxu0 0
    %416 = vmatmul.mubr.bf16.gmra.mxu0 %v257
    %v417 = vpop.f32.mrf.mxu0
    %v418 = vadd.f32 0.0, %v417
    %v419 = vpop.f32.mrf.mxu0
    %v420 = vpop.f32.mrf.mxu0
    %v421 = vadd.f32 0.0, %v420
    %v422 = vpop.f32.mrf.mxu0
    %423 = vmatprep.mubr.bf16.mxu0 0
    %424 = vmatmul.mubr.bf16.gmra.mxu0 %v258
    %v425 = vpop.f32.mrf.mxu0
    %v426 = vadd.f32 0.0, %v425
    %v427 = vpop.f32.mrf.mxu0
    %v428 = vpop.f32.mrf.mxu0
    %v429 = vadd.f32 0.0, %v428
    %v430 = vpop.f32.mrf.mxu0
    %431 = vmatprep.mubr.bf16.mxu0 0
    %432 = vmatmul.mubr.bf16.gmra.mxu0 %v259
    %v433 = vpop.f32.mrf.mxu0
    %v434 = vadd.f32 0.0, %v433
    %v435 = vpop.f32.mrf.mxu0
    %v436 = vpop.f32.mrf.mxu0
    %v437 = vadd.f32 0.0, %v436
    %v438 = vpop.f32.mrf.mxu0
    %439 = vmatprep.mubr.bf16.mxu0 0
    %440 = vmatmul.mubr.bf16.gmra.mxu0 %v260
    %v441 = vpop.f32.mrf.mxu0
    %v442 = vadd.f32 0.0, %v441
    %v443 = vpop.f32.mrf.mxu0
    %v444 = vpop.f32.mrf.mxu0
    %v445 = vadd.f32 0.0, %v444
    %v446 = vpop.f32.mrf.mxu0
    %447 = vmatprep.mubr.bf16.mxu0 0
    %448 = vmatmul.mubr.bf16.gmra.mxu0 %v261
    %v449 = vpop.f32.mrf.mxu0
    %v450 = vadd.f32 0.0, %v449
    %v451 = vpop.f32.mrf.mxu0
    %v452 = vpop.f32.mrf.mxu0
    %v453 = vadd.f32 0.0, %v452
    %v454 = vpop.f32.mrf.mxu0
    %455 = vmatprep.mubr.bf16.mxu0 0
    %456 = vmatmul.mubr.bf16.gmra.mxu0 %v262
    %v457 = vpop.f32.mrf.mxu0
    %v458 = vadd.f32 0.0, %v457
    %v459 = vpop.f32.mrf.mxu0
    %v460 = vpop.f32.mrf.mxu0
    %v461 = vadd.f32 0.0, %v460
    %v462 = vpop.f32.mrf.mxu0
    %463 = vmatprep.mubr.bf16.mxu0 0
    %464 = vmatmul.mubr.bf16.gmra.mxu0 %v263
    %v465 = vpop.f32.mrf.mxu0
    %v466 = vadd.f32 0.0, %v465
    %v467 = vpop.f32.mrf.mxu0
    %v468 = vpop.f32.mrf.mxu0
    %v469 = vadd.f32 0.0, %v468
    %v470 = vpop.f32.mrf.mxu0
    %471 = vmatprep.mubr.bf16.mxu0 0
    %472 = vmatmul.mubr.bf16.gmra.mxu0 %v264
    %v473 = vpop.f32.mrf.mxu0
    %v474 = vadd.f32 0.0, %v473
    %v475 = vpop.f32.mrf.mxu0
    %v476 = vpop.f32.mrf.mxu0
    %v477 = vadd.f32 0.0, %v476
    %v478 = vpop.f32.mrf.mxu0
    %479 = vmatprep.mubr.bf16.mxu0 0
    %480 = vmatmul.mubr.bf16.gmra.mxu0 %v265
    %v481 = vpop.f32.mrf.mxu0
    %v482 = vadd.f32 0.0, %v481
    %v483 = vpop.f32.mrf.mxu0
    %v484 = vpop.f32.mrf.mxu0
    %v485 = vadd.f32 0.0, %v484
    %v486 = vpop.f32.mrf.mxu0
    %487 = vmatprep.mubr.bf16.mxu0 0
    %488 = vmatmul.mubr.bf16.gmra.mxu0 %v266
    %v489 = vpop.f32.mrf.mxu0
    %v490 = vadd.f32 0.0, %v489
    %v491 = vpop.f32.mrf.mxu0
    %v492 = vpop.f32.mrf.mxu0
    %v493 = vadd.f32 0.0, %v492
    %v494 = vpop.f32.mrf.mxu0
    %495 = vmatprep.mubr.bf16.mxu0 0
    %496 = vmatmul.mubr.bf16.gmra.mxu0 %v267
    %v497 = vpop.f32.mrf.mxu0
    %v498 = vadd.f32 0.0, %v497
    %v499 = vpop.f32.mrf.mxu0
    %v500 = vpop.f32.mrf.mxu0
    %v501 = vadd.f32 0.0, %v500
    %v502 = vpop.f32.mrf.mxu0
    %503 = vmatprep.mubr.bf16.mxu0 0
    %504 = vmatmul.mubr.bf16.gmra.mxu0 %v268
    %v505 = vpop.f32.mrf.mxu0
    %v506 = vadd.f32 0.0, %v505
    %v507 = vpop.f32.mrf.mxu0
    %v508 = vpop.f32.mrf.mxu0
    %v509 = vadd.f32 0.0, %v508
    %v510 = vpop.f32.mrf.mxu0
    %511 = vmatprep.mubr.bf16.mxu0 0
    %512 = vmatmul.mubr.bf16.gmra.mxu0 %v269
    %v513 = vpop.f32.mrf.mxu0
    %v514 = vadd.f32 0.0, %v513
    %v515 = vpop.f32.mrf.mxu0
    %v516 = vpop.f32.mrf.mxu0
    %v517 = vadd.f32 0.0, %v516
    %v518 = vpop.f32.mrf.mxu0
    %519 = vmatprep.mubr.bf16.mxu0 0
    %520 = vmatmul.mubr.bf16.gmra.mxu0 %v270
    %v521 = vpop.f32.mrf.mxu0
    %v522 = vadd.f32 0.0, %v521
    %v523 = vpop.f32.mrf.mxu0
    %v524 = vpop.f32.mrf.mxu0
    %v525 = vadd.f32 0.0, %v524
    %v526 = vpop.f32.mrf.mxu0
    %527 = vmatprep.mubr.bf16.mxu0 0
    %528 = vmatmul.mubr.bf16.gmra.mxu0 %v271
    %v529 = vpop.f32.mrf.mxu0
    %v530 = vadd.f32 0.0, %v529
    %v531 = vpop.f32.mrf.mxu0
    %v532 = vpop.f32.mrf.mxu0
    %v533 = vadd.f32 0.0, %v532
    %v534 = vpop.f32.mrf.mxu0
    %535 = vmatprep.mubr.bf16.mxu0 0
    %536 = vmatmul.mubr.bf16.gmra.mxu0 %v272
    %v537 = vpop.f32.mrf.mxu0
    %v538 = vadd.f32 0.0, %v537
    %v539 = vpop.f32.mrf.mxu0
    %v540 = vpop.f32.mrf.mxu0
    %v541 = vadd.f32 0.0, %v540
    %v542 = vpop.f32.mrf.mxu0
    %543 = vmatprep.mubr.bf16.mxu0 0
    %544 = vmatmul.mubr.bf16.gmra.mxu0 %v273
    %v545 = vpop.f32.mrf.mxu0
    %v546 = vadd.f32 0.0, %v545
    %v547 = vpop.f32.mrf.mxu0
    %v548 = vpop.f32.mrf.mxu0
    %v549 = vadd.f32 0.0, %v548
    %v550 = vpop.f32.mrf.mxu0
    %551 = vmatprep.mubr.bf16.mxu0 0
    %552 = vmatmul.mubr.bf16.gmra.mxu0 %v274
    %v553 = vpop.f32.mrf.mxu0
    %v554 = vadd.f32 0.0, %v553
    %v555 = vpop.f32.mrf.mxu0
    %v556 = vpop.f32.mrf.mxu0
    %v557 = vadd.f32 0.0, %v556
    %v558 = vpop.f32.mrf.mxu0
    %559 = vmatprep.mubr.bf16.mxu0 0
    %560 = vmatmul.mubr.bf16.gmra.mxu0 %v275
    %v561 = vpop.f32.mrf.mxu0
    %v562 = vadd.f32 0.0, %v561
    %v563 = vpop.f32.mrf.mxu0
    %v564 = vpop.f32.mrf.mxu0
    %v565 = vadd.f32 0.0, %v564
    %v566 = vpop.f32.mrf.mxu0
    %567 = vmatprep.mubr.bf16.mxu0 0
    %568 = vmatmul.mubr.bf16.gmra.mxu0 %v276
    %v569 = vpop.f32.mrf.mxu0
    %v570 = vadd.f32 0.0, %v569
    %v571 = vpop.f32.mrf.mxu0
    %v572 = vpop.f32.mrf.mxu0
    %v573 = vadd.f32 0.0, %v572
    %v574 = vpop.f32.mrf.mxu0
    %575 = vmatprep.mubr.bf16.mxu0 0
    %576 = vmatmul.mubr.bf16.gmra.mxu0 %v277
    %v577 = vpop.f32.mrf.mxu0
    %v578 = vadd.f32 0.0, %v577
    %v579 = vpop.f32.mrf.mxu0
    %v580 = vpop.f32.mrf.mxu0
    %v581 = vadd.f32 0.0, %v580
    %v582 = vpop.f32.mrf.mxu0
    %583 = vmatprep.mubr.bf16.mxu0 0
    %584 = vmatmul.mubr.bf16.gmra.mxu0 %v278
    %v585 = vpop.f32.mrf.mxu0
    %v586 = vadd.f32 0.0, %v585
    %v587 = vpop.f32.mrf.mxu0
    %v588 = vpop.f32.mrf.mxu0
    %v589 = vadd.f32 0.0, %v588
    %v590 = vpop.f32.mrf.mxu0
    %591 = vmatprep.mubr.bf16.mxu0 0
    %592 = vmatmul.mubr.bf16.gmra.mxu0 %v279
    %v593 = vpop.f32.mrf.mxu0
    %v594 = vadd.f32 0.0, %v593
    %v595 = vpop.f32.mrf.mxu0
    %v596 = vpop.f32.mrf.mxu0
    %v597 = vadd.f32 0.0, %v596
    %v598 = vpop.f32.mrf.mxu0
    %599 = vmatprep.mubr.bf16.mxu0 0
    %600 = vmatmul.mubr.bf16.gmra.mxu0 %v280
    %v601 = vpop.f32.mrf.mxu0
    %v602 = vadd.f32 0.0, %v601
    %v603 = vpop.f32.mrf.mxu0
    %v604 = vpop.f32.mrf.mxu0
    %v605 = vadd.f32 0.0, %v604
    %v606 = vpop.f32.mrf.mxu0
    %607 = vmatprep.mubr.bf16.mxu0 0
    %608 = vmatmul.mubr.bf16.gmra.mxu0 %v281
    %v609 = vpop.f32.mrf.mxu0
    %v610 = vadd.f32 0.0, %v609
    %v611 = vpop.f32.mrf.mxu0
    %v612 = vpop.f32.mrf.mxu0
    %v613 = vadd.f32 0.0, %v612
    %v614 = vpop.f32.mrf.mxu0
    %615 = vmatprep.mubr.bf16.mxu0 0
    %616 = vmatmul.mubr.bf16.gmra.mxu0 %v282
    %v617 = vpop.f32.mrf.mxu0
    %v618 = vadd.f32 0.0, %v617
    %v619 = vpop.f32.mrf.mxu0
    %v620 = vpop.f32.mrf.mxu0
    %v621 = vadd.f32 0.0, %v620
    %v622 = vpop.f32.mrf.mxu0
    %623 = vmatprep.mubr.bf16.mxu0 0
    %624 = vmatmul.mubr.bf16.gmra.mxu0 %v283
    %v625 = vpop.f32.mrf.mxu0
    %v626 = vadd.f32 0.0, %v625
    %v627 = vpop.f32.mrf.mxu0
    %v628 = vpop.f32.mrf.mxu0
    %v629 = vadd.f32 0.0, %v628
    %v630 = vpop.f32.mrf.mxu0
    %631 = vmatprep.mubr.bf16.mxu0 0
    %632 = vmatmul.mubr.bf16.gmra.mxu0 %v284
    %v633 = vpop.f32.mrf.mxu0
    %v634 = vadd.f32 0.0, %v633
    %v635 = vpop.f32.mrf.mxu0
    %v636 = vpop.f32.mrf.mxu0
    %v637 = vadd.f32 0.0, %v636
    %v638 = vpop.f32.mrf.mxu0
    %639 = vmatprep.mubr.bf16.mxu0 0
    %640 = vmatmul.mubr.bf16.gmra.mxu0 %v285
    %v641 = vpop.f32.mrf.mxu0
    %v642 = vadd.f32 0.0, %v641
    %v643 = vpop.f32.mrf.mxu0
    %v644 = vpop.f32.mrf.mxu0
    %v645 = vadd.f32 0.0, %v644
    %v646 = vpop.f32.mrf.mxu0
    %647 = vmatprep.mubr.bf16.mxu0 0
    %648 = vmatmul.mubr.bf16.gmra.mxu0 %v286
    %v649 = vpop.f32.mrf.mxu0
    %v650 = vadd.f32 0.0, %v649
    %v651 = vpop.f32.mrf.mxu0
    %v652 = vpop.f32.mrf.mxu0
    %v653 = vadd.f32 0.0, %v652
    %v654 = vpop.f32.mrf.mxu0
    %655 = vdwg.mxu0
    %p656 = scmp.eq.s32.totalorder 0, 0
    // Predicated region
    $region26: #{tpu_custom_call.1} parent=1 // pred_check
      %p657 = pneg %p656
    $region27: #{tpu_custom_call.1} parent=1 // pred_check_branch
      %659 = sbr.rel (%p657) target = $region29
    $region28: #{tpu_custom_call.1} parent=1 // pred_region
      %660 = vst [vmem:[#allocation7] sm:$0xff] %v402
      %661 = vst [vmem:[#allocation7 + $0x8] sm:$0xff] %v405
      %662 = vst [vmem:[#allocation7 + $0x10] sm:$0xff] %v410
      %663 = vst [vmem:[#allocation7 + $0x18] sm:$0xff] %v413
      %664 = vst [vmem:[#allocation7 + $0x20] sm:$0xff] %v418
      %665 = vst [vmem:[#allocation7 + $0x28] sm:$0xff] %v421
      %666 = vst [vmem:[#allocation7 + $0x30] sm:$0xff] %v426
      %667 = vst [vmem:[#allocation7 + $0x38] sm:$0xff] %v429
      %668 = vst [vmem:[#allocation7 + $0x40] sm:$0xff] %v434
      %669 = vst [vmem:[#allocation7 + $0x48] sm:$0xff] %v437
      %670 = vst [vmem:[#allocation7 + $0x50] sm:$0xff] %v442
      %671 = vst [vmem:[#allocation7 + $0x58] sm:$0xff] %v445
      %672 = vst [vmem:[#allocation7 + $0x60] sm:$0xff] %v450
      %673 = vst [vmem:[#allocation7 + $0x68] sm:$0xff] %v453
      %674 = vst [vmem:[#allocation7 + $0x70] sm:$0xff] %v458
      %675 = vst [vmem:[#allocation7 + $0x78] sm:$0xff] %v461
      %676 = vst [vmem:[#allocation7 + $0x80] sm:$0xff] %v466
      %677 = vst [vmem:[#allocation7 + $0x88] sm:$0xff] %v469
      %678 = vst [vmem:[#allocation7 + $0x90] sm:$0xff] %v474
      %679 = vst [vmem:[#allocation7 + $0x98] sm:$0xff] %v477
      %680 = vst [vmem:[#allocation7 + $0xa0] sm:$0xff] %v482
      %681 = vst [vmem:[#allocation7 + $0xa8] sm:$0xff] %v485
      %682 = vst [vmem:[#allocation7 + $0xb0] sm:$0xff] %v490
      %683 = vst [vmem:[#allocation7 + $0xb8] sm:$0xff] %v493
      %684 = vst [vmem:[#allocation7 + $0xc0] sm:$0xff] %v498
      %685 = vst [vmem:[#allocation7 + $0xc8] sm:$0xff] %v501
      %686 = vst [vmem:[#allocation7 + $0xd0] sm:$0xff] %v506
      %687 = vst [vmem:[#allocation7 + $0xd8] sm:$0xff] %v509
      %688 = vst [vmem:[#allocation7 + $0xe0] sm:$0xff] %v514
      %689 = vst [vmem:[#allocation7 + $0xe8] sm:$0xff] %v517
      %690 = vst [vmem:[#allocation7 + $0xf0] sm:$0xff] %v522
      %691 = vst [vmem:[#allocation7 + $0xf8] sm:$0xff] %v525
      %692 = vst [vmem:[#allocation7 + $0x100] sm:$0xff] %v530
      %693 = vst [vmem:[#allocation7 + $0x108] sm:$0xff] %v533
      %694 = vst [vmem:[#allocation7 + $0x110] sm:$0xff] %v538
      %695 = vst [vmem:[#allocation7 + $0x118] sm:$0xff] %v541
      %696 = vst [vmem:[#allocation7 + $0x120] sm:$0xff] %v546
      %697 = vst [vmem:[#allocation7 + $0x128] sm:$0xff] %v549
      %698 = vst [vmem:[#allocation7 + $0x130] sm:$0xff] %v554
      %699 = vst [vmem:[#allocation7 + $0x138] sm:$0xff] %v557
      %700 = vst [vmem:[#allocation7 + $0x140] sm:$0xff] %v562
      %701 = vst [vmem:[#allocation7 + $0x148] sm:$0xff] %v565
      %702 = vst [vmem:[#allocation7 + $0x150] sm:$0xff] %v570
      %703 = vst [vmem:[#allocation7 + $0x158] sm:$0xff] %v573
      %704 = vst [vmem:[#allocation7 + $0x160] sm:$0xff] %v578
      %705 = vst [vmem:[#allocation7 + $0x168] sm:$0xff] %v581
      %706 = vst [vmem:[#allocation7 + $0x170] sm:$0xff] %v586
      %707 = vst [vmem:[#allocation7 + $0x178] sm:$0xff] %v589
      %708 = vst [vmem:[#allocation7 + $0x180] sm:$0xff] %v594
      %709 = vst [vmem:[#allocation7 + $0x188] sm:$0xff] %v597
      %710 = vst [vmem:[#allocation7 + $0x190] sm:$0xff] %v602
      %711 = vst [vmem:[#allocation7 + $0x198] sm:$0xff] %v605
      %712 = vst [vmem:[#allocation7 + $0x1a0] sm:$0xff] %v610
      %713 = vst [vmem:[#allocation7 + $0x1a8] sm:$0xff] %v613
      %714 = vst [vmem:[#allocation7 + $0x1b0] sm:$0xff] %v618
      %715 = vst [vmem:[#allocation7 + $0x1b8] sm:$0xff] %v621
      %716 = vst [vmem:[#allocation7 + $0x1c0] sm:$0xff] %v626
      %717 = vst [vmem:[#allocation7 + $0x1c8] sm:$0xff] %v629
      %718 = vst [vmem:[#allocation7 + $0x1d0] sm:$0xff] %v634
      %719 = vst [vmem:[#allocation7 + $0x1d8] sm:$0xff] %v637
      %720 = vst [vmem:[#allocation7 + $0x1e0] sm:$0xff] %v642
      %721 = vst [vmem:[#allocation7 + $0x1e8] sm:$0xff] %v645
      %722 = vst [vmem:[#allocation7 + $0x1f0] sm:$0xff] %v650
      %723 = vst [vmem:[#allocation7 + $0x1f8] sm:$0xff] %v653
    $region29: #{tpu_custom_call.1} parent=1 // pred_fallthru
      _
    %p724 = scmp.gt.s32.totalorder 0, 0
    // Predicated region
    $region30: #{tpu_custom_call.1} parent=1 // pred_check
      %p725 = pneg %p724
    $region31: #{tpu_custom_call.1} parent=1 // pred_check_branch
      %727 = sbr.rel (%p725) target = $region33
    $region32: #{tpu_custom_call.1} parent=1 // pred_region
      %v728 = vld [vmem:[#allocation7] sm:$0xff]
      %v729 = vld [vmem:[#allocation7 + $0x8] sm:$0xff]
      %v730 = vld [vmem:[#allocation7 + $0x10] sm:$0xff]
      %v731 = vld [vmem:[#allocation7 + $0x18] sm:$0xff]
      %v732 = vld [vmem:[#allocation7 + $0x20] sm:$0xff]
      %v733 = vld [vmem:[#allocation7 + $0x28] sm:$0xff]
      %v734 = vld [vmem:[#allocation7 + $0x30] sm:$0xff]
      %v735 = vld [vmem:[#allocation7 + $0x38] sm:$0xff]
      %v736 = vld [vmem:[#allocation7 + $0x40] sm:$0xff]
      %v737 = vld [vmem:[#allocation7 + $0x48] sm:$0xff]
      %v738 = vld [vmem:[#allocation7 + $0x50] sm:$0xff]
      %v739 = vld [vmem:[#allocation7 + $0x58] sm:$0xff]
      %v740 = vld [vmem:[#allocation7 + $0x60] sm:$0xff]
      %v741 = vld [vmem:[#allocation7 + $0x68] sm:$0xff]
      %v742 = vld [vmem:[#allocation7 + $0x70] sm:$0xff]
      %v743 = vld [vmem:[#allocation7 + $0x78] sm:$0xff]
      %v744 = vld [vmem:[#allocation7 + $0x80] sm:$0xff]
      %v745 = vld [vmem:[#allocation7 + $0x88] sm:$0xff]
      %v746 = vld [vmem:[#allocation7 + $0x90] sm:$0xff]
      %v747 = vld [vmem:[#allocation7 + $0x98] sm:$0xff]
      %v748 = vld [vmem:[#allocation7 + $0xa0] sm:$0xff]
      %v749 = vld [vmem:[#allocation7 + $0xa8] sm:$0xff]
      %v750 = vld [vmem:[#allocation7 + $0xb0] sm:$0xff]
      %v751 = vld [vmem:[#allocation7 + $0xb8] sm:$0xff]
      %v752 = vld [vmem:[#allocation7 + $0xc0] sm:$0xff]
      %v753 = vld [vmem:[#allocation7 + $0xc8] sm:$0xff]
      %v754 = vld [vmem:[#allocation7 + $0xd0] sm:$0xff]
      %v755 = vld [vmem:[#allocation7 + $0xd8] sm:$0xff]
      %v756 = vld [vmem:[#allocation7 + $0xe0] sm:$0xff]
      %v757 = vld [vmem:[#allocation7 + $0xe8] sm:$0xff]
      %v758 = vld [vmem:[#allocation7 + $0xf0] sm:$0xff]
      %v759 = vld [vmem:[#allocation7 + $0xf8] sm:$0xff]
      %v760 = vld [vmem:[#allocation7 + $0x100] sm:$0xff]
      %v761 = vld [vmem:[#allocation7 + $0x108] sm:$0xff]
      %v762 = vld [vmem:[#allocation7 + $0x110] sm:$0xff]
      %v763 = vld [vmem:[#allocation7 + $0x118] sm:$0xff]
      %v764 = vld [vmem:[#allocation7 + $0x120] sm:$0xff]
      %v765 = vld [vmem:[#allocation7 + $0x128] sm:$0xff]
      %v766 = vld [vmem:[#allocation7 + $0x130] sm:$0xff]
      %v767 = vld [vmem:[#allocation7 + $0x138] sm:$0xff]
      %v768 = vld [vmem:[#allocation7 + $0x140] sm:$0xff]
      %v769 = vld [vmem:[#allocation7 + $0x148] sm:$0xff]
      %v770 = vld [vmem:[#allocation7 + $0x150] sm:$0xff]
      %v771 = vld [vmem:[#allocation7 + $0x158] sm:$0xff]
      %v772 = vld [vmem:[#allocation7 + $0x160] sm:$0xff]
      %v773 = vld [vmem:[#allocation7 + $0x168] sm:$0xff]
      %v774 = vld [vmem:[#allocation7 + $0x170] sm:$0xff]
      %v775 = vld [vmem:[#allocation7 + $0x178] sm:$0xff]
      %v776 = vld [vmem:[#allocation7 + $0x180] sm:$0xff]
      %v777 = vld [vmem:[#allocation7 + $0x188] sm:$0xff]
      %v778 = vld [vmem:[#allocation7 + $0x190] sm:$0xff]
      %v779 = vld [vmem:[#allocation7 + $0x198] sm:$0xff]
      %v780 = vld [vmem:[#allocation7 + $0x1a0] sm:$0xff]
      %v781 = vld [vmem:[#allocation7 + $0x1a8] sm:$0xff]
      %v782 = vld [vmem:[#allocation7 + $0x1b0] sm:$0xff]
      %v783 = vld [vmem:[#allocation7 + $0x1b8] sm:$0xff]
      %v784 = vld [vmem:[#allocation7 + $0x1c0] sm:$0xff]
      %v785 = vld [vmem:[#allocation7 + $0x1c8] sm:$0xff]
      %v786 = vld [vmem:[#allocation7 + $0x1d0] sm:$0xff]
      %v787 = vld [vmem:[#allocation7 + $0x1d8] sm:$0xff]
      %v788 = vld [vmem:[#allocation7 + $0x1e0] sm:$0xff]
      %v789 = vld [vmem:[#allocation7 + $0x1e8] sm:$0xff]
      %v790 = vld [vmem:[#allocation7 + $0x1f0] sm:$0xff]
      %v791 = vld [vmem:[#allocation7 + $0x1f8] sm:$0xff]
      %v792 = vadd.f32 %v728, %v402
      %v793 = vadd.f32 %v729, %v405
      %v794 = vadd.f32 %v730, %v410
      %v795 = vadd.f32 %v731, %v413
      %v796 = vadd.f32 %v732, %v418
      %v797 = vadd.f32 %v733, %v421
      %v798 = vadd.f32 %v734, %v426
      %v799 = vadd.f32 %v735, %v429
      %v800 = vadd.f32 %v736, %v434
      %v801 = vadd.f32 %v737, %v437
      %v802 = vadd.f32 %v738, %v442
      %v803 = vadd.f32 %v739, %v445
      %v804 = vadd.f32 %v740, %v450
      %v805 = vadd.f32 %v741, %v453
      %v806 = vadd.f32 %v742, %v458
      %v807 = vadd.f32 %v743, %v461
      %v808 = vadd.f32 %v744, %v466
      %v809 = vadd.f32 %v745, %v469
      %v810 = vadd.f32 %v746, %v474
      %v811 = vadd.f32 %v747, %v477
      %v812 = vadd.f32 %v748, %v482
      %v813 = vadd.f32 %v749, %v485
      %v814 = vadd.f32 %v750, %v490
      %v815 = vadd.f32 %v751, %v493
      %v816 = vadd.f32 %v752, %v498
      %v817 = vadd.f32 %v753, %v501
      %v818 = vadd.f32 %v754, %v506
      %v819 = vadd.f32 %v755, %v509
      %v820 = vadd.f32 %v756, %v514
      %v821 = vadd.f32 %v757, %v517
      %v822 = vadd.f32 %v758, %v522
      %v823 = vadd.f32 %v759, %v525
      %v824 = vadd.f32 %v760, %v530
      %v825 = vadd.f32 %v761, %v533
      %v826 = vadd.f32 %v762, %v538
      %v827 = vadd.f32 %v763, %v541
      %v828 = vadd.f32 %v764, %v546
      %v829 = vadd.f32 %v765, %v549
      %v830 = vadd.f32 %v766, %v554
      %v831 = vadd.f32 %v767, %v557
      %v832 = vadd.f32 %v768, %v562
      %v833 = vadd.f32 %v769, %v565
      %v834 = vadd.f32 %v770, %v570
      %v835 = vadd.f32 %v771, %v573
      %v836 = vadd.f32 %v772, %v578
      %v837 = vadd.f32 %v773, %v581
      %v838 = vadd.f32 %v774, %v586
      %v839 = vadd.f32 %v775, %v589
      %v840 = vadd.f32 %v776, %v594
      %v841 = vadd.f32 %v777, %v597
      %v842 = vadd.f32 %v778, %v602
      %v843 = vadd.f32 %v779, %v605
      %v844 = vadd.f32 %v780, %v610
      %v845 = vadd.f32 %v781, %v613
      %v846 = vadd.f32 %v782, %v618
      %v847 = vadd.f32 %v783, %v621
      %v848 = vadd.f32 %v784, %v626
      %v849 = vadd.f32 %v785, %v629
      %v850 = vadd.f32 %v786, %v634
      %v851 = vadd.f32 %v787, %v637
      %v852 = vadd.f32 %v788, %v642
      %v853 = vadd.f32 %v789, %v645
      %v854 = vadd.f32 %v790, %v650
      %v855 = vadd.f32 %v791, %v653
      %856 = vst [vmem:[#allocation7] sm:$0xff] %v792
      %857 = vst [vmem:[#allocation7 + $0x8] sm:$0xff] %v793
      %858 = vst [vmem:[#allocation7 + $0x10] sm:$0xff] %v794
      %859 = vst [vmem:[#allocation7 + $0x18] sm:$0xff] %v795
      %860 = vst [vmem:[#allocation7 + $0x20] sm:$0xff] %v796
      %861 = vst [vmem:[#allocation7 + $0x28] sm:$0xff] %v797
      %862 = vst [vmem:[#allocation7 + $0x30] sm:$0xff] %v798
      %863 = vst [vmem:[#allocation7 + $0x38] sm:$0xff] %v799
      %864 = vst [vmem:[#allocation7 + $0x40] sm:$0xff] %v800
      %865 = vst [vmem:[#allocation7 + $0x48] sm:$0xff] %v801
      %866 = vst [vmem:[#allocation7 + $0x50] sm:$0xff] %v802
      %867 = vst [vmem:[#allocation7 + $0x58] sm:$0xff] %v803
      %868 = vst [vmem:[#allocation7 + $0x60] sm:$0xff] %v804
      %869 = vst [vmem:[#allocation7 + $0x68] sm:$0xff] %v805
      %870 = vst [vmem:[#allocation7 + $0x70] sm:$0xff] %v806
      %871 = vst [vmem:[#allocation7 + $0x78] sm:$0xff] %v807
      %872 = vst [vmem:[#allocation7 + $0x80] sm:$0xff] %v808
      %873 = vst [vmem:[#allocation7 + $0x88] sm:$0xff] %v809
      %874 = vst [vmem:[#allocation7 + $0x90] sm:$0xff] %v810
      %875 = vst [vmem:[#allocation7 + $0x98] sm:$0xff] %v811
      %876 = vst [vmem:[#allocation7 + $0xa0] sm:$0xff] %v812
      %877 = vst [vmem:[#allocation7 + $0xa8] sm:$0xff] %v813
      %878 = vst [vmem:[#allocation7 + $0xb0] sm:$0xff] %v814
      %879 = vst [vmem:[#allocation7 + $0xb8] sm:$0xff] %v815
      %880 = vst [vmem:[#allocation7 + $0xc0] sm:$0xff] %v816
      %881 = vst [vmem:[#allocation7 + $0xc8] sm:$0xff] %v817
      %882 = vst [vmem:[#allocation7 + $0xd0] sm:$0xff] %v818
      %883 = vst [vmem:[#allocation7 + $0xd8] sm:$0xff] %v819
      %884 = vst [vmem:[#allocation7 + $0xe0] sm:$0xff] %v820
      %885 = vst [vmem:[#allocation7 + $0xe8] sm:$0xff] %v821
      %886 = vst [vmem:[#allocation7 + $0xf0] sm:$0xff] %v822
      %887 = vst [vmem:[#allocation7 + $0xf8] sm:$0xff] %v823
      %888 = vst [vmem:[#allocation7 + $0x100] sm:$0xff] %v824
      %889 = vst [vmem:[#allocation7 + $0x108] sm:$0xff] %v825
      %890 = vst [vmem:[#allocation7 + $0x110] sm:$0xff] %v826
      %891 = vst [vmem:[#allocation7 + $0x118] sm:$0xff] %v827
      %892 = vst [vmem:[#allocation7 + $0x120] sm:$0xff] %v828
      %893 = vst [vmem:[#allocation7 + $0x128] sm:$0xff] %v829
      %894 = vst [vmem:[#allocation7 + $0x130] sm:$0xff] %v830
      %895 = vst [vmem:[#allocation7 + $0x138] sm:$0xff] %v831
      %896 = vst [vmem:[#allocation7 + $0x140] sm:$0xff] %v832
      %897 = vst [vmem:[#allocation7 + $0x148] sm:$0xff] %v833
      %898 = vst [vmem:[#allocation7 + $0x150] sm:$0xff] %v834
      %899 = vst [vmem:[#allocation7 + $0x158] sm:$0xff] %v835
      %900 = vst [vmem:[#allocation7 + $0x160] sm:$0xff] %v836
      %901 = vst [vmem:[#allocation7 + $0x168] sm:$0xff] %v837
      %902 = vst [vmem:[#allocation7 + $0x170] sm:$0xff] %v838
      %903 = vst [vmem:[#allocation7 + $0x178] sm:$0xff] %v839
      %904 = vst [vmem:[#allocation7 + $0x180] sm:$0xff] %v840
      %905 = vst [vmem:[#allocation7 + $0x188] sm:$0xff] %v841
      %906 = vst [vmem:[#allocation7 + $0x190] sm:$0xff] %v842
      %907 = vst [vmem:[#allocation7 + $0x198] sm:$0xff] %v843
      %908 = vst [vmem:[#allocation7 + $0x1a0] sm:$0xff] %v844
      %909 = vst [vmem:[#allocation7 + $0x1a8] sm:$0xff] %v845
      %910 = vst [vmem:[#allocation7 + $0x1b0] sm:$0xff] %v846
      %911 = vst [vmem:[#allocation7 + $0x1b8] sm:$0xff] %v847
      %912 = vst [vmem:[#allocation7 + $0x1c0] sm:$0xff] %v848
      %913 = vst [vmem:[#allocation7 + $0x1c8] sm:$0xff] %v849
      %914 = vst [vmem:[#allocation7 + $0x1d0] sm:$0xff] %v850
      %915 = vst [vmem:[#allocation7 + $0x1d8] sm:$0xff] %v851
      %916 = vst [vmem:[#allocation7 + $0x1e0] sm:$0xff] %v852
      %917 = vst [vmem:[#allocation7 + $0x1e8] sm:$0xff] %v853
      %918 = vst [vmem:[#allocation7 + $0x1f0] sm:$0xff] %v854
      %919 = vst [vmem:[#allocation7 + $0x1f8] sm:$0xff] %v855
    $region33: #{tpu_custom_call.1} parent=1 // pred_fallthru
      _
    // Predicated region
    $region34: #{tpu_custom_call.1} parent=1 // pred_check
      %p920 = pneg %p656
    $region35: #{tpu_custom_call.1} parent=1 // pred_check_branch
      %922 = sbr.rel (%p920) target = $region37
    $region36: #{tpu_custom_call.1} parent=1 // pred_region
      %v923 = vld [vmem:[#allocation7] sm:$0xff]
      %v924 = vld [vmem:[#allocation7 + $0x8] sm:$0xff]
      %v925 = vld [vmem:[#allocation7 + $0x10] sm:$0xff]
      %v926 = vld [vmem:[#allocation7 + $0x18] sm:$0xff]
      %v927 = vld [vmem:[#allocation7 + $0x20] sm:$0xff]
      %v928 = vld [vmem:[#allocation7 + $0x28] sm:$0xff]
      %v929 = vld [vmem:[#allocation7 + $0x30] sm:$0xff]
      %v930 = vld [vmem:[#allocation7 + $0x38] sm:$0xff]
      %v931 = vld [vmem:[#allocation7 + $0x40] sm:$0xff]
      %v932 = vld [vmem:[#allocation7 + $0x48] sm:$0xff]
      %v933 = vld [vmem:[#allocation7 + $0x50] sm:$0xff]
      %v934 = vld [vmem:[#allocation7 + $0x58] sm:$0xff]
      %v935 = vld [vmem:[#allocation7 + $0x60] sm:$0xff]
      %v936 = vld [vmem:[#allocation7 + $0x68] sm:$0xff]
      %v937 = vld [vmem:[#allocation7 + $0x70] sm:$0xff]
      %v938 = vld [vmem:[#allocation7 + $0x78] sm:$0xff]
      %v939 = vld [vmem:[#allocation7 + $0x80] sm:$0xff]
      %v940 = vld [vmem:[#allocation7 + $0x88] sm:$0xff]
      %v941 = vld [vmem:[#allocation7 + $0x90] sm:$0xff]
      %v942 = vld [vmem:[#allocation7 + $0x98] sm:$0xff]
      %v943 = vld [vmem:[#allocation7 + $0xa0] sm:$0xff]
      %v944 = vld [vmem:[#allocation7 + $0xa8] sm:$0xff]
      %v945 = vld [vmem:[#allocation7 + $0xb0] sm:$0xff]
      %v946 = vld [vmem:[#allocation7 + $0xb8] sm:$0xff]
      %v947 = vld [vmem:[#allocation7 + $0xc0] sm:$0xff]
      %v948 = vld [vmem:[#allocation7 + $0xc8] sm:$0xff]
      %v949 = vld [vmem:[#allocation7 + $0xd0] sm:$0xff]
      %v950 = vld [vmem:[#allocation7 + $0xd8] sm:$0xff]
      %v951 = vld [vmem:[#allocation7 + $0xe0] sm:$0xff]
      %v952 = vld [vmem:[#allocation7 + $0xe8] sm:$0xff]
      %v953 = vld [vmem:[#allocation7 + $0xf0] sm:$0xff]
      %v954 = vld [vmem:[#allocation7 + $0xf8] sm:$0xff]
      %v955 = vld [vmem:[#allocation7 + $0x100] sm:$0xff]
      %v956 = vld [vmem:[#allocation7 + $0x108] sm:$0xff]
      %v957 = vld [vmem:[#allocation7 + $0x110] sm:$0xff]
      %v958 = vld [vmem:[#allocation7 + $0x118] sm:$0xff]
      %v959 = vld [vmem:[#allocation7 + $0x120] sm:$0xff]
      %v960 = vld [vmem:[#allocation7 + $0x128] sm:$0xff]
      %v961 = vld [vmem:[#allocation7 + $0x130] sm:$0xff]
      %v962 = vld [vmem:[#allocation7 + $0x138] sm:$0xff]
      %v963 = vld [vmem:[#allocation7 + $0x140] sm:$0xff]
      %v964 = vld [vmem:[#allocation7 + $0x148] sm:$0xff]
      %v965 = vld [vmem:[#allocation7 + $0x150] sm:$0xff]
      %v966 = vld [vmem:[#allocation7 + $0x158] sm:$0xff]
      %v967 = vld [vmem:[#allocation7 + $0x160] sm:$0xff]
      %v968 = vld [vmem:[#allocation7 + $0x168] sm:$0xff]
      %v969 = vld [vmem:[#allocation7 + $0x170] sm:$0xff]
      %v970 = vld [vmem:[#allocation7 + $0x178] sm:$0xff]
      %v971 = vld [vmem:[#allocation7 + $0x180] sm:$0xff]
      %v972 = vld [vmem:[#allocation7 + $0x188] sm:$0xff]
      %v973 = vld [vmem:[#allocation7 + $0x190] sm:$0xff]
      %v974 = vld [vmem:[#allocation7 + $0x198] sm:$0xff]
      %v975 = vld [vmem:[#allocation7 + $0x1a0] sm:$0xff]
      %v976 = vld [vmem:[#allocation7 + $0x1a8] sm:$0xff]
      %v977 = vld [vmem:[#allocation7 + $0x1b0] sm:$0xff]
      %v978 = vld [vmem:[#allocation7 + $0x1b8] sm:$0xff]
      %v979 = vld [vmem:[#allocation7 + $0x1c0] sm:$0xff]
      %v980 = vld [vmem:[#allocation7 + $0x1c8] sm:$0xff]
      %v981 = vld [vmem:[#allocation7 + $0x1d0] sm:$0xff]
      %v982 = vld [vmem:[#allocation7 + $0x1d8] sm:$0xff]
      %v983 = vld [vmem:[#allocation7 + $0x1e0] sm:$0xff]
      %v984 = vld [vmem:[#allocation7 + $0x1e8] sm:$0xff]
      %v985 = vld [vmem:[#allocation7 + $0x1f0] sm:$0xff]
      %v986 = vld [vmem:[#allocation7 + $0x1f8] sm:$0xff]
      %v987 = vadd.f32 %v923, %v924
      %v988 = vadd.f32 %v987, %v925
      %v989 = vadd.f32 %v988, %v926
      %v990 = vadd.f32 %v989, %v927
      %v991 = vadd.f32 %v990, %v928
      %v992 = vadd.f32 %v991, %v929
      %v993 = vadd.f32 %v992, %v930
      %v994 = vadd.f32 %v993, %v931
      %v995 = vadd.f32 %v994, %v932
      %v996 = vadd.f32 %v995, %v933
      %v997 = vadd.f32 %v996, %v934
      %v998 = vadd.f32 %v997, %v935
      %v999 = vadd.f32 %v998, %v936
      %v1000 = vadd.f32 %v999, %v937
      %v1001 = vadd.f32 %v1000, %v938
      %v1002 = vadd.f32 %v1001, %v939
      %v1003 = vadd.f32 %v1002, %v940
      %v1004 = vadd.f32 %v1003, %v941
      %v1005 = vadd.f32 %v1004, %v942
      %v1006 = vadd.f32 %v1005, %v943
      %v1007 = vadd.f32 %v1006, %v944
      %v1008 = vadd.f32 %v1007, %v945
      %v1009 = vadd.f32 %v1008, %v946
      %v1010 = vadd.f32 %v1009, %v947
      %v1011 = vadd.f32 %v1010, %v948
      %v1012 = vadd.f32 %v1011, %v949
      %v1013 = vadd.f32 %v1012, %v950
      %v1014 = vadd.f32 %v1013, %v951
      %v1015 = vadd.f32 %v1014, %v952
      %v1016 = vadd.f32 %v1015, %v953
      %v1017 = vadd.f32 %v1016, %v954
      %v1018 = vadd.f32 %v1017, %v955
      %v1019 = vadd.f32 %v1018, %v956
      %v1020 = vadd.f32 %v1019, %v957
      %v1021 = vadd.f32 %v1020, %v958
      %v1022 = vadd.f32 %v1021, %v959
      %v1023 = vadd.f32 %v1022, %v960
      %v1024 = vadd.f32 %v1023, %v961
      %v1025 = vadd.f32 %v1024, %v962
      %v1026 = vadd.f32 %v1025, %v963
      %v1027 = vadd.f32 %v1026, %v964
      %v1028 = vadd.f32 %v1027, %v965
      %v1029 = vadd.f32 %v1028, %v966
      %v1030 = vadd.f32 %v1029, %v967
      %v1031 = vadd.f32 %v1030, %v968
      %v1032 = vadd.f32 %v1031, %v969
      %v1033 = vadd.f32 %v1032, %v970
      %v1034 = vadd.f32 %v1033, %v971
      %v1035 = vadd.f32 %v1034, %v972
      %v1036 = vadd.f32 %v1035, %v973
      %v1037 = vadd.f32 %v1036, %v974
      %v1038 = vadd.f32 %v1037, %v975
      %v1039 = vadd.f32 %v1038, %v976
      %v1040 = vadd.f32 %v1039, %v977
      %v1041 = vadd.f32 %v1040, %v978
      %v1042 = vadd.f32 %v1041, %v979
      %v1043 = vadd.f32 %v1042, %v980
      %v1044 = vadd.f32 %v1043, %v981
      %v1045 = vadd.f32 %v1044, %v982
      %v1046 = vadd.f32 %v1045, %v983
      %v1047 = vadd.f32 %v1046, %v984
      %v1048 = vadd.f32 %v1047, %v985
      %v1049 = vadd.f32 %v1048, %v986
      %v1050 = vrot.slane %v1049, 4
      %v1051 = vadd.f32 %v1049, %v1050
      %v1052 = vrot.slane %v1051, 2
      %v1053 = vadd.f32 %v1051, %v1052
      %v1054 = vrot.slane %v1053, 1
      %v1055 = vadd.f32 %v1053, %v1054
      %v1056 = vmul.f32 %v1055, 0.001953125
      %v1057 = vmul.f32 %v923, %v923
      %v1058 = vmul.f32 %v924, %v924
      %v1059 = vmul.f32 %v925, %v925
      %v1060 = vmul.f32 %v926, %v926
      %v1061 = vmul.f32 %v927, %v927
      %v1062 = vmul.f32 %v928, %v928
      %v1063 = vmul.f32 %v929, %v929
      %v1064 = vmul.f32 %v930, %v930
      %v1065 = vmul.f32 %v931, %v931
      %v1066 = vmul.f32 %v932, %v932
      %v1067 = vmul.f32 %v933, %v933
      %v1068 = vmul.f32 %v934, %v934
      %v1069 = vmul.f32 %v935, %v935
      %v1070 = vmul.f32 %v936, %v936
      %v1071 = vmul.f32 %v937, %v937
      %v1072 = vmul.f32 %v938, %v938
      %v1073 = vmul.f32 %v939, %v939
      %v1074 = vmul.f32 %v940, %v940
      %v1075 = vmul.f32 %v941, %v941
      %v1076 = vmul.f32 %v942, %v942
      %v1077 = vmul.f32 %v943, %v943
      %v1078 = vmul.f32 %v944, %v944
      %v1079 = vmul.f32 %v945, %v945
      %v1080 = vmul.f32 %v946, %v946
      %v1081 = vmul.f32 %v947, %v947
      %v1082 = vmul.f32 %v948, %v948
      %v1083 = vmul.f32 %v949, %v949
      %v1084 = vmul.f32 %v950, %v950
      %v1085 = vmul.f32 %v951, %v951
      %v1086 = vmul.f32 %v952, %v952
      %v1087 = vmul.f32 %v953, %v953
      %v1088 = vmul.f32 %v954, %v954
      %v1089 = vmul.f32 %v955, %v955
      %v1090 = vmul.f32 %v956, %v956
      %v1091 = vmul.f32 %v957, %v957
      %v1092 = vmul.f32 %v958, %v958
      %v1093 = vmul.f32 %v959, %v959
      %v1094 = vmul.f32 %v960, %v960
      %v1095 = vmul.f32 %v961, %v961
      %v1096 = vmul.f32 %v962, %v962
      %v1097 = vmul.f32 %v963, %v963
      %v1098 = vmul.f32 %v964, %v964
      %v1099 = vmul.f32 %v965, %v965
      %v1100 = vmul.f32 %v966, %v966
      %v1101 = vmul.f32 %v967, %v967
      %v1102 = vmul.f32 %v968, %v968
      %v1103 = vmul.f32 %v969, %v969
      %v1104 = vmul.f32 %v970, %v970
      %v1105 = vmul.f32 %v971, %v971
      %v1106 = vmul.f32 %v972, %v972
      %v1107 = vmul.f32 %v973, %v973
      %v1108 = vmul.f32 %v974, %v974
      %v1109 = vmul.f32 %v975, %v975
      %v1110 = vmul.f32 %v976, %v976
      %v1111 = vmul.f32 %v977, %v977
      %v1112 = vmul.f32 %v978, %v978
      %v1113 = vmul.f32 %v979, %v979
      %v1114 = vmul.f32 %v980, %v980
      %v1115 = vmul.f32 %v981, %v981
      %v1116 = vmul.f32 %v982, %v982
      %v1117 = vmul.f32 %v983, %v983
      %v1118 = vmul.f32 %v984, %v984
      %v1119 = vmul.f32 %v985, %v985
      %v1120 = vmul.f32 %v986, %v986
      %v1121 = vadd.f32 %v1057, %v1058
      %v1122 = vadd.f32 %v1121, %v1059
      %v1123 = vadd.f32 %v1122, %v1060
      %v1124 = vadd.f32 %v1123, %v1061
      %v1125 = vadd.f32 %v1124, %v1062
      %v1126 = vadd.f32 %v1125, %v1063
      %v1127 = vadd.f32 %v1126, %v1064
      %v1128 = vadd.f32 %v1127, %v1065
      %v1129 = vadd.f32 %v1128, %v1066
      %v1130 = vadd.f32 %v1129, %v1067
      %v1131 = vadd.f32 %v1130, %v1068
      %v1132 = vadd.f32 %v1131, %v1069
      %v1133 = vadd.f32 %v1132, %v1070
      %v1134 = vadd.f32 %v1133, %v1071
      %v1135 = vadd.f32 %v1134, %v1072
      %v1136 = vadd.f32 %v1135, %v1073
      %v1137 = vadd.f32 %v1136, %v1074
      %v1138 = vadd.f32 %v1137, %v1075
      %v1139 = vadd.f32 %v1138, %v1076
      %v1140 = vadd.f32 %v1139, %v1077
      %v1141 = vadd.f32 %v1140, %v1078
      %v1142 = vadd.f32 %v1141, %v1079
      %v1143 = vadd.f32 %v1142, %v1080
      %v1144 = vadd.f32 %v1143, %v1081
      %v1145 = vadd.f32 %v1144, %v1082
      %v1146 = vadd.f32 %v1145, %v1083
      %v1147 = vadd.f32 %v1146, %v1084
      %v1148 = vadd.f32 %v1147, %v1085
      %v1149 = vadd.f32 %v1148, %v1086
      %v1150 = vadd.f32 %v1149, %v1087
      %v1151 = vadd.f32 %v1150, %v1088
      %v1152 = vadd.f32 %v1151, %v1089
      %v1153 = vadd.f32 %v1152, %v1090
      %v1154 = vadd.f32 %v1153, %v1091
      %v1155 = vadd.f32 %v1154, %v1092
      %v1156 = vadd.f32 %v1155, %v1093
      %v1157 = vadd.f32 %v1156, %v1094
      %v1158 = vadd.f32 %v1157, %v1095
      %v1159 = vadd.f32 %v1158, %v1096
      %v1160 = vadd.f32 %v1159, %v1097
      %v1161 = vadd.f32 %v1160, %v1098
      %v1162 = vadd.f32 %v1161, %v1099
      %v1163 = vadd.f32 %v1162, %v1100
      %v1164 = vadd.f32 %v1163, %v1101
      %v1165 = vadd.f32 %v1164, %v1102
      %v1166 = vadd.f32 %v1165, %v1103
      %v1167 = vadd.f32 %v1166, %v1104
      %v1168 = vadd.f32 %v1167, %v1105
      %v1169 = vadd.f32 %v1168, %v1106
      %v1170 = vadd.f32 %v1169, %v1107
      %v1171 = vadd.f32 %v1170, %v1108
      %v1172 = vadd.f32 %v1171, %v1109
      %v1173 = vadd.f32 %v1172, %v1110
      %v1174 = vadd.f32 %v1173, %v1111
      %v1175 = vadd.f32 %v1174, %v1112
      %v1176 = vadd.f32 %v1175, %v1113
      %v1177 = vadd.f32 %v1176, %v1114
      %v1178 = vadd.f32 %v1177, %v1115
      %v1179 = vadd.f32 %v1178, %v1116
      %v1180 = vadd.f32 %v1179, %v1117
      %v1181 = vadd.f32 %v1180, %v1118
      %v1182 = vadd.f32 %v1181, %v1119
      %v1183 = vadd.f32 %v1182, %v1120
      %v1184 = vrot.slane %v1183, 4
      %v1185 = vadd.f32 %v1183, %v1184
      %v1186 = vrot.slane %v1185, 2
      %v1187 = vadd.f32 %v1185, %v1186
      %v1188 = vrot.slane %v1187, 1
      %v1189 = vadd.f32 %v1187, %v1188
      %v1190 = vmul.f32 %v1189, 0.001953125
      %v1191 = vmul.f32 %v1056, %v1056
      %v1192 = vsub.f32 %v1190, %v1191
      %v1193 = vadd.f32 %v1192, 1e-05
      %v1194 = vrsqrt.pop %v1193
      %v1195 = vld [vmem:[%s2] sm:$0x1]
      %v1196 = vmul.f32 %v1194, %v1195
      %v1197 = vsub.f32 %v923, %v1056
      %v1198 = vsub.f32 %v924, %v1056
      %v1199 = vsub.f32 %v925, %v1056
      %v1200 = vsub.f32 %v926, %v1056
      %v1201 = vsub.f32 %v927, %v1056
      %v1202 = vsub.f32 %v928, %v1056
      %v1203 = vsub.f32 %v929, %v1056
      %v1204 = vsub.f32 %v930, %v1056
      %v1205 = vsub.f32 %v931, %v1056
      %v1206 = vsub.f32 %v932, %v1056
      %v1207 = vsub.f32 %v933, %v1056
      %v1208 = vsub.f32 %v934, %v1056
      %v1209 = vsub.f32 %v935, %v1056
      %v1210 = vsub.f32 %v936, %v1056
      %v1211 = vsub.f32 %v937, %v1056
      %v1212 = vsub.f32 %v938, %v1056
      %v1213 = vsub.f32 %v939, %v1056
      %v1214 = vsub.f32 %v940, %v1056
      %v1215 = vsub.f32 %v941, %v1056
      %v1216 = vsub.f32 %v942, %v1056
      %v1217 = vsub.f32 %v943, %v1056
      %v1218 = vsub.f32 %v944, %v1056
      %v1219 = vsub.f32 %v945, %v1056
      %v1220 = vsub.f32 %v946, %v1056
      %v1221 = vsub.f32 %v947, %v1056
      %v1222 = vsub.f32 %v948, %v1056
      %v1223 = vsub.f32 %v949, %v1056
      %v1224 = vsub.f32 %v950, %v1056
      %v1225 = vsub.f32 %v951, %v1056
      %v1226 = vsub.f32 %v952, %v1056
      %v1227 = vsub.f32 %v953, %v1056
      %v1228 = vsub.f32 %v954, %v1056
      %v1229 = vsub.f32 %v955, %v1056
      %v1230 = vsub.f32 %v956, %v1056
      %v1231 = vsub.f32 %v957, %v1056
      %v1232 = vsub.f32 %v958, %v1056
      %v1233 = vsub.f32 %v959, %v1056
      %v1234 = vsub.f32 %v960, %v1056
      %v1235 = vsub.f32 %v961, %v1056
      %v1236 = vsub.f32 %v962, %v1056
      %v1237 = vsub.f32 %v963, %v1056
      %v1238 = vsub.f32 %v964, %v1056
      %v1239 = vsub.f32 %v965, %v1056
      %v1240 = vsub.f32 %v966, %v1056
      %v1241 = vsub.f32 %v967, %v1056
      %v1242 = vsub.f32 %v968, %v1056
      %v1243 = vsub.f32 %v969, %v1056
      %v1244 = vsub.f32 %v970, %v1056
      %v1245 = vsub.f32 %v971, %v1056
      %v1246 = vsub.f32 %v972, %v1056
      %v1247 = vsub.f32 %v973, %v1056
      %v1248 = vsub.f32 %v974, %v1056
      %v1249 = vsub.f32 %v975, %v1056
      %v1250 = vsub.f32 %v976, %v1056
      %v1251 = vsub.f32 %v977, %v1056
      %v1252 = vsub.f32 %v978, %v1056
      %v1253 = vsub.f32 %v979, %v1056
      %v1254 = vsub.f32 %v980, %v1056
      %v1255 = vsub.f32 %v981, %v1056
      %v1256 = vsub.f32 %v982, %v1056
      %v1257 = vsub.f32 %v983, %v1056
      %v1258 = vsub.f32 %v984, %v1056
      %v1259 = vsub.f32 %v985, %v1056
      %v1260 = vsub.f32 %v986, %v1056
      %v1261 = vlaneseq
      %v1262 = vshrl.u32 %v1261, 7
      %v1263 = vsub.s32 0, %v1262
      %v1264 = vrot.slane %v1196, %v1263
      %v1265 = vmul.f32 %v1197, %v1264
      %v1266 = vmul.f32 %v1198, %v1264
      %v1267 = vmul.f32 %v1199, %v1264
      %v1268 = vmul.f32 %v1200, %v1264
      %v1269 = vmul.f32 %v1201, %v1264
      %v1270 = vmul.f32 %v1202, %v1264
      %v1271 = vmul.f32 %v1203, %v1264
      %v1272 = vmul.f32 %v1204, %v1264
      %v1273 = vmul.f32 %v1205, %v1264
      %v1274 = vmul.f32 %v1206, %v1264
      %v1275 = vmul.f32 %v1207, %v1264
      %v1276 = vmul.f32 %v1208, %v1264
      %v1277 = vmul.f32 %v1209, %v1264
      %v1278 = vmul.f32 %v1210, %v1264
      %v1279 = vmul.f32 %v1211, %v1264
      %v1280 = vmul.f32 %v1212, %v1264
      %v1281 = vmul.f32 %v1213, %v1264
      %v1282 = vmul.f32 %v1214, %v1264
      %v1283 = vmul.f32 %v1215, %v1264
      %v1284 = vmul.f32 %v1216, %v1264
      %v1285 = vmul.f32 %v1217, %v1264
      %v1286 = vmul.f32 %v1218, %v1264
      %v1287 = vmul.f32 %v1219, %v1264
      %v1288 = vmul.f32 %v1220, %v1264
      %v1289 = vmul.f32 %v1221, %v1264
      %v1290 = vmul.f32 %v1222, %v1264
      %v1291 = vmul.f32 %v1223, %v1264
      %v1292 = vmul.f32 %v1224, %v1264
      %v1293 = vmul.f32 %v1225, %v1264
      %v1294 = vmul.f32 %v1226, %v1264
      %v1295 = vmul.f32 %v1227, %v1264
      %v1296 = vmul.f32 %v1228, %v1264
      %v1297 = vmul.f32 %v1229, %v1264
      %v1298 = vmul.f32 %v1230, %v1264
      %v1299 = vmul.f32 %v1231, %v1264
      %v1300 = vmul.f32 %v1232, %v1264
      %v1301 = vmul.f32 %v1233, %v1264
      %v1302 = vmul.f32 %v1234, %v1264
      %v1303 = vmul.f32 %v1235, %v1264
      %v1304 = vmul.f32 %v1236, %v1264
      %v1305 = vmul.f32 %v1237, %v1264
      %v1306 = vmul.f32 %v1238, %v1264
      %v1307 = vmul.f32 %v1239, %v1264
      %v1308 = vmul.f32 %v1240, %v1264
      %v1309 = vmul.f32 %v1241, %v1264
      %v1310 = vmul.f32 %v1242, %v1264
      %v1311 = vmul.f32 %v1243, %v1264
      %v1312 = vmul.f32 %v1244, %v1264
      %v1313 = vmul.f32 %v1245, %v1264
      %v1314 = vmul.f32 %v1246, %v1264
      %v1315 = vmul.f32 %v1247, %v1264
      %v1316 = vmul.f32 %v1248, %v1264
      %v1317 = vmul.f32 %v1249, %v1264
      %v1318 = vmul.f32 %v1250, %v1264
      %v1319 = vmul.f32 %v1251, %v1264
      %v1320 = vmul.f32 %v1252, %v1264
      %v1321 = vmul.f32 %v1253, %v1264
      %v1322 = vmul.f32 %v1254, %v1264
      %v1323 = vmul.f32 %v1255, %v1264
      %v1324 = vmul.f32 %v1256, %v1264
      %v1325 = vmul.f32 %v1257, %v1264
      %v1326 = vmul.f32 %v1258, %v1264
      %v1327 = vmul.f32 %v1259, %v1264
      %v1328 = vmul.f32 %v1260, %v1264
      %v1329 = vld [vmem:[%s3] sm:$0x1]
      %v1331 = vlaneseq
      %v1332 = vshrl.u32 %v1331, 7
      %v1333 = vsub.s32 0, %v1332
      %v1334 = vrot.slane %v1329, %v1333
      %v1336 = vadd.f32 %v1265, %v1334
      %v1337 = vadd.f32 %v1266, %v1334
      %v1338 = vadd.f32 %v1267, %v1334
      %v1339 = vadd.f32 %v1268, %v1334
      %v1340 = vadd.f32 %v1269, %v1334
      %v1341 = vadd.f32 %v1270, %v1334
      %v1342 = vadd.f32 %v1271, %v1334
      %v1343 = vadd.f32 %v1272, %v1334
      %v1344 = vadd.f32 %v1273, %v1334
      %v1345 = vadd.f32 %v1274, %v1334
      %v1346 = vadd.f32 %v1275, %v1334
      %v1347 = vadd.f32 %v1276, %v1334
      %v1348 = vadd.f32 %v1277, %v1334
      %v1349 = vadd.f32 %v1278, %v1334
      %v1350 = vadd.f32 %v1279, %v1334
      %v1351 = vadd.f32 %v1280, %v1334
      %v1352 = vadd.f32 %v1281, %v1334
      %v1353 = vadd.f32 %v1282, %v1334
      %v1354 = vadd.f32 %v1283, %v1334
      %v1355 = vadd.f32 %v1284, %v1334
      %v1356 = vadd.f32 %v1285, %v1334
      %v1357 = vadd.f32 %v1286, %v1334
      %v1358 = vadd.f32 %v1287, %v1334
      %v1359 = vadd.f32 %v1288, %v1334
      %v1360 = vadd.f32 %v1289, %v1334
      %v1361 = vadd.f32 %v1290, %v1334
      %v1362 = vadd.f32 %v1291, %v1334
      %v1363 = vadd.f32 %v1292, %v1334
      %v1364 = vadd.f32 %v1293, %v1334
      %v1365 = vadd.f32 %v1294, %v1334
      %v1366 = vadd.f32 %v1295, %v1334
      %v1367 = vadd.f32 %v1296, %v1334
      %v1368 = vadd.f32 %v1297, %v1334
      %v1369 = vadd.f32 %v1298, %v1334
      %v1370 = vadd.f32 %v1299, %v1334
      %v1371 = vadd.f32 %v1300, %v1334
      %v1372 = vadd.f32 %v1301, %v1334
      %v1373 = vadd.f32 %v1302, %v1334
      %v1374 = vadd.f32 %v1303, %v1334
      %v1375 = vadd.f32 %v1304, %v1334
      %v1376 = vadd.f32 %v1305, %v1334
      %v1377 = vadd.f32 %v1306, %v1334
      %v1378 = vadd.f32 %v1307, %v1334
      %v1379 = vadd.f32 %v1308, %v1334
      %v1380 = vadd.f32 %v1309, %v1334
      %v1381 = vadd.f32 %v1310, %v1334
      %v1382 = vadd.f32 %v1311, %v1334
      %v1383 = vadd.f32 %v1312, %v1334
      %v1384 = vadd.f32 %v1313, %v1334
      %v1385 = vadd.f32 %v1314, %v1334
      %v1386 = vadd.f32 %v1315, %v1334
      %v1387 = vadd.f32 %v1316, %v1334
      %v1388 = vadd.f32 %v1317, %v1334
      %v1389 = vadd.f32 %v1318, %v1334
      %v1390 = vadd.f32 %v1319, %v1334
      %v1391 = vadd.f32 %v1320, %v1334
      %v1392 = vadd.f32 %v1321, %v1334
      %v1393 = vadd.f32 %v1322, %v1334
      %v1394 = vadd.f32 %v1323, %v1334
      %v1395 = vadd.f32 %v1324, %v1334
      %v1396 = vadd.f32 %v1325, %v1334
      %v1397 = vadd.f32 %v1326, %v1334
      %v1398 = vadd.f32 %v1327, %v1334
      %v1399 = vadd.f32 %v1328, %v1334
      %v1400 = vmax.f32 %v1336, 0.0
      %v1401 = vmax.f32 %v1337, 0.0
      %v1402 = vmax.f32 %v1338, 0.0
      %v1403 = vmax.f32 %v1339, 0.0
      %v1404 = vmax.f32 %v1340, 0.0
      %v1405 = vmax.f32 %v1341, 0.0
      %v1406 = vmax.f32 %v1342, 0.0
      %v1407 = vmax.f32 %v1343, 0.0
      %v1408 = vmax.f32 %v1344, 0.0
      %v1409 = vmax.f32 %v1345, 0.0
      %v1410 = vmax.f32 %v1346, 0.0
      %v1411 = vmax.f32 %v1347, 0.0
      %v1412 = vmax.f32 %v1348, 0.0
      %v1413 = vmax.f32 %v1349, 0.0
      %v1414 = vmax.f32 %v1350, 0.0
      %v1415 = vmax.f32 %v1351, 0.0
      %v1416 = vmax.f32 %v1352, 0.0
      %v1417 = vmax.f32 %v1353, 0.0
      %v1418 = vmax.f32 %v1354, 0.0
      %v1419 = vmax.f32 %v1355, 0.0
      %v1420 = vmax.f32 %v1356, 0.0
      %v1421 = vmax.f32 %v1357, 0.0
      %v1422 = vmax.f32 %v1358, 0.0
      %v1423 = vmax.f32 %v1359, 0.0
      %v1424 = vmax.f32 %v1360, 0.0
      %v1425 = vmax.f32 %v1361, 0.0
      %v1426 = vmax.f32 %v1362, 0.0
      %v1427 = vmax.f32 %v1363, 0.0
      %v1428 = vmax.f32 %v1364, 0.0
      %v1429 = vmax.f32 %v1365, 0.0
      %v1430 = vmax.f32 %v1366, 0.0
      %v1431 = vmax.f32 %v1367, 0.0
      %v1432 = vmax.f32 %v1368, 0.0
      %v1433 = vmax.f32 %v1369, 0.0
      %v1434 = vmax.f32 %v1370, 0.0
      %v1435 = vmax.f32 %v1371, 0.0
      %v1436 = vmax.f32 %v1372, 0.0
      %v1437 = vmax.f32 %v1373, 0.0
      %v1438 = vmax.f32 %v1374, 0.0
      %v1439 = vmax.f32 %v1375, 0.0
      %v1440 = vmax.f32 %v1376, 0.0
      %v1441 = vmax.f32 %v1377, 0.0
      %v1442 = vmax.f32 %v1378, 0.0
      %v1443 = vmax.f32 %v1379, 0.0
      %v1444 = vmax.f32 %v1380, 0.0
      %v1445 = vmax.f32 %v1381, 0.0
      %v1446 = vmax.f32 %v1382, 0.0
      %v1447 = vmax.f32 %v1383, 0.0
      %v1448 = vmax.f32 %v1384, 0.0
      %v1449 = vmax.f32 %v1385, 0.0
      %v1450 = vmax.f32 %v1386, 0.0
      %v1451 = vmax.f32 %v1387, 0.0
      %v1452 = vmax.f32 %v1388, 0.0
      %v1453 = vmax.f32 %v1389, 0.0
      %v1454 = vmax.f32 %v1390, 0.0
      %v1455 = vmax.f32 %v1391, 0.0
      %v1456 = vmax.f32 %v1392, 0.0
      %v1457 = vmax.f32 %v1393, 0.0
      %v1458 = vmax.f32 %v1394, 0.0
      %v1459 = vmax.f32 %v1395, 0.0
      %v1460 = vmax.f32 %v1396, 0.0
      %v1461 = vmax.f32 %v1397, 0.0
      %v1462 = vmax.f32 %v1398, 0.0
      %v1463 = vmax.f32 %v1399, 0.0
      %1464 = vst [vmem:[#allocation7] sm:$0xff] %v1400
      %1465 = vst [vmem:[#allocation7 + $0x8] sm:$0xff] %v1401
      %1466 = vst [vmem:[#allocation7 + $0x10] sm:$0xff] %v1402
      %1467 = vst [vmem:[#allocation7 + $0x18] sm:$0xff] %v1403
      %1468 = vst [vmem:[#allocation7 + $0x20] sm:$0xff] %v1404
      %1469 = vst [vmem:[#allocation7 + $0x28] sm:$0xff] %v1405
      %1470 = vst [vmem:[#allocation7 + $0x30] sm:$0xff] %v1406
      %1471 = vst [vmem:[#allocation7 + $0x38] sm:$0xff] %v1407
      %1472 = vst [vmem:[#allocation7 + $0x40] sm:$0xff] %v1408
      %1473 = vst [vmem:[#allocation7 + $0x48] sm:$0xff] %v1409
      %1474 = vst [vmem:[#allocation7 + $0x50] sm:$0xff] %v1410
      %1475 = vst [vmem:[#allocation7 + $0x58] sm:$0xff] %v1411
      %1476 = vst [vmem:[#allocation7 + $0x60] sm:$0xff] %v1412
      %1477 = vst [vmem:[#allocation7 + $0x68] sm:$0xff] %v1413
      %1478 = vst [vmem:[#allocation7 + $0x70] sm:$0xff] %v1414
      %1479 = vst [vmem:[#allocation7 + $0x78] sm:$0xff] %v1415
      %1480 = vst [vmem:[#allocation7 + $0x80] sm:$0xff] %v1416
      %1481 = vst [vmem:[#allocation7 + $0x88] sm:$0xff] %v1417
      %1482 = vst [vmem:[#allocation7 + $0x90] sm:$0xff] %v1418
      %1483 = vst [vmem:[#allocation7 + $0x98] sm:$0xff] %v1419
      %1484 = vst [vmem:[#allocation7 + $0xa0] sm:$0xff] %v1420
      %1485 = vst [vmem:[#allocation7 + $0xa8] sm:$0xff] %v1421
      %1486 = vst [vmem:[#allocation7 + $0xb0] sm:$0xff] %v1422
      %1487 = vst [vmem:[#allocation7 + $0xb8] sm:$0xff] %v1423
      %1488 = vst [vmem:[#allocation7 + $0xc0] sm:$0xff] %v1424
      %1489 = vst [vmem:[#allocation7 + $0xc8] sm:$0xff] %v1425
      %1490 = vst [vmem:[#allocation7 + $0xd0] sm:$0xff] %v1426
      %1491 = vst [vmem:[#allocation7 + $0xd8] sm:$0xff] %v1427
      %1492 = vst [vmem:[#allocation7 + $0xe0] sm:$0xff] %v1428
      %1493 = vst [vmem:[#allocation7 + $0xe8] sm:$0xff] %v1429
      %1494 = vst [vmem:[#allocation7 + $0xf0] sm:$0xff] %v1430
      %1495 = vst [vmem:[#allocation7 + $0xf8] sm:$0xff] %v1431
      %1496 = vst [vmem:[#allocation7 + $0x100] sm:$0xff] %v1432
      %1497 = vst [vmem:[#allocation7 + $0x108] sm:$0xff] %v1433
      %1498 = vst [vmem:[#allocation7 + $0x110] sm:$0xff] %v1434
      %1499 = vst [vmem:[#allocation7 + $0x118] sm:$0xff] %v1435
      %1500 = vst [vmem:[#allocation7 + $0x120] sm:$0xff] %v1436
      %1501 = vst [vmem:[#allocation7 + $0x128] sm:$0xff] %v1437
      %1502 = vst [vmem:[#allocation7 + $0x130] sm:$0xff] %v1438
      %1503 = vst [vmem:[#allocation7 + $0x138] sm:$0xff] %v1439
      %1504 = vst [vmem:[#allocation7 + $0x140] sm:$0xff] %v1440
      %1505 = vst [vmem:[#allocation7 + $0x148] sm:$0xff] %v1441
      %1506 = vst [vmem:[#allocation7 + $0x150] sm:$0xff] %v1442
      %1507 = vst [vmem:[#allocation7 + $0x158] sm:$0xff] %v1443
      %1508 = vst [vmem:[#allocation7 + $0x160] sm:$0xff] %v1444
      %1509 = vst [vmem:[#allocation7 + $0x168] sm:$0xff] %v1445
      %1510 = vst [vmem:[#allocation7 + $0x170] sm:$0xff] %v1446
      %1511 = vst [vmem:[#allocation7 + $0x178] sm:$0xff] %v1447
      %1512 = vst [vmem:[#allocation7 + $0x180] sm:$0xff] %v1448
      %1513 = vst [vmem:[#allocation7 + $0x188] sm:$0xff] %v1449
      %1514 = vst [vmem:[#allocation7 + $0x190] sm:$0xff] %v1450
      %1515 = vst [vmem:[#allocation7 + $0x198] sm:$0xff] %v1451
      %1516 = vst [vmem:[#allocation7 + $0x1a0] sm:$0xff] %v1452
      %1517 = vst [vmem:[#allocation7 + $0x1a8] sm:$0xff] %v1453
      %1518 = vst [vmem:[#allocation7 + $0x1b0] sm:$0xff] %v1454
      %1519 = vst [vmem:[#allocation7 + $0x1b8] sm:$0xff] %v1455
      %1520 = vst [vmem:[#allocation7 + $0x1c0] sm:$0xff] %v1456
      %1521 = vst [vmem:[#allocation7 + $0x1c8] sm:$0xff] %v1457
      %1522 = vst [vmem:[#allocation7 + $0x1d0] sm:$0xff] %v1458
      %1523 = vst [vmem:[#allocation7 + $0x1d8] sm:$0xff] %v1459
      %1524 = vst [vmem:[#allocation7 + $0x1e0] sm:$0xff] %v1460
      %1525 = vst [vmem:[#allocation7 + $0x1e8] sm:$0xff] %v1461
      %1526 = vst [vmem:[#allocation7 + $0x1f0] sm:$0xff] %v1462
      %1527 = vst [vmem:[#allocation7 + $0x1f8] sm:$0xff] %v1463
    $region37: #{tpu_custom_call.1} parent=1 // pred_fallthru
      _
    // Predicated region
    $region38: #{tpu_custom_call.1} parent=1 // pred_check
      _
    $region39: #{tpu_custom_call.1} parent=1 // pred_check_branch
      %1529 = sbr.rel (0) target = $region41
    $region40: #{tpu_custom_call.1} parent=1 // pred_region
      %s1531 = ssub.s32 8192, 8192
      %1532 = vsyncadd [#allocation4], %s1531
      %s1533 = sshll.u32 [#allocation7], 4
      %s1534 = int_to_ptr.vmem [resolvable:$true] %s1533
      %1539 = dma.vmem_to_hbm [thread:$0]  %s1534, 8192, %s4, [#allocation4], 128, 128, 8
    $region41: #{tpu_custom_call.1} parent=1 // pred_fallthru
      _
    // Predicated region
    $region42: #{tpu_custom_call.1} parent=1 // pred_check
      _
    $region43: #{tpu_custom_call.1} parent=1 // pred_check_branch
      %1541 = sbr.rel (0) target = $region45
    $region44: #{tpu_custom_call.1} parent=1 // pred_region
      %1542 = dma.done [#allocation4], 8192
    $region45: #{tpu_custom_call.1} parent=1 // pred_fallthru
      _
    %1543 = vsyncpa [#allocation3], 1
    %1544 = vsyncpa [#allocation6], 1
    %1545 = vsyncpa [#allocation4], 1

</llo_original>
